<compile_context>
chip_gen: v7x
topology: tpu7x:2x2x1
jax: 0.10.0
libtpu: 0.0.40
codegen_flags: <defaults>
</compile_context>

<pallas_src>
import jax
import jax.numpy as jnp
from jax.experimental import pallas as pl
from jax.experimental.pallas import tpu as pltpu


def lstm_kernel(x_ref, wih_ref, whh_ref, b_ref, wfc_ref, bfc_ref, out_ref, gx_ref):
    """Whole-sequence LSTM + final Linear in a single invocation.

    x_ref   : (S*Bp, I)     time-major inputs, row index = t*Bp + b
    wih_ref : (I, 4*Hp)     input->gates weight, gate order (i,f,o,g), lane-padded
    whh_ref : (Hp, 4*Hp)    hidden->gates weight, row- and per-gate lane-padded
    b_ref   : (1, 4*Hp)     combined bias (b_ih + b_hh), reordered + padded
    wfc_ref : (Hp, Op)      fc weight (padded rows/cols are zero)
    bfc_ref : (1, Op)       fc bias (padded lanes zero)
    out_ref : (Bp, Op)      output = fc(h_S) (padded rows/lanes sliced in wrapper)
    gx_ref  : (S*Bp, 4*Hp)  VMEM scratch: time-major staged input projections
    """
    Bp = out_ref.shape[0]
    SBp, H4p = gx_ref.shape
    S = SBp // Bp
    Hp = H4p // 4

    # ---- prologue (off the recurrent critical path): one MXU matmul projects
    # all timesteps at once; x is already time-major so this is a single
    # contiguous bulk store into the staging scratch. ----
    gx_ref[...] = (jnp.dot(x_ref[...], wih_ref[...],
                           preferred_element_type=jnp.float32) + b_ref[...])

    # ---- recurrence: only h @ W_hh + elementwise gate math per step ----
    def step(t, carry):
        h, c = carry
        row = pl.multiple_of(t * Bp, Bp)                       # sublane-aligned slab
        gates = gx_ref[pl.ds(row, Bp), :] + jnp.dot(
            h, whh_ref[...], preferred_element_type=jnp.float32)  # (Bp, 4Hp)
        # Gate order (i, f, o, g): the three sigmoid gates are one contiguous
        # lane span -> fewer EUP pushes on the serial critical path.
        sig = jax.nn.sigmoid(gates[:, : 3 * Hp])
        i_g = sig[:, 0 * Hp:1 * Hp]
        f_g = sig[:, 1 * Hp:2 * Hp]
        o_g = sig[:, 2 * Hp:3 * Hp]
        g_g = jnp.tanh(gates[:, 3 * Hp:4 * Hp])
        c = f_g * c + i_g * g_g
        h = o_g * jnp.tanh(c)
        return h, c

    h0 = jnp.zeros((Bp, Hp), jnp.float32)
    c0 = jnp.zeros((Bp, Hp), jnp.float32)
    h_last, _ = jax.lax.fori_loop(0, S, step, (h0, c0), unroll=True)

    # ---- fc applied to the last timestep's hidden state (lane-dense store) ----
    out_ref[...] = (jnp.dot(h_last, wfc_ref[...],
                            preferred_element_type=jnp.float32) + bfc_ref[...])


@jax.jit
def simple_lstm_forward(x, w_ih, w_hh, b_ih, b_hh, w_fc, b_fc):
    """x: (B, S, I) float32; params in PyTorch nn.LSTM / nn.Linear layout.

    Returns fc(h_S): (B, O) float32 (same semantics as SimpleLSTM.forward).
    """
    B, S, I = x.shape
    H = w_hh.shape[1]
    O = w_fc.shape[0]
    Bp = ((B + 7) // 8) * 8                  # sublane-pad batch
    Hp = ((H + 127) // 128) * 128            # lane-pad hidden dim (per gate)
    Op = ((O + 127) // 128) * 128            # lane-pad fc output

    order = (0, 1, 3, 2)                     # PyTorch (i,f,g,o) -> kernel (i,f,o,g)

    def pad_gates(w_t):                      # (rows, 4H) -> (rows, 4*Hp), reordered
        r = w_t.shape[0]
        w4 = w_t.reshape(r, 4, H)[:, order, :]
        return (jnp.zeros((r, 4, Hp), jnp.float32).at[:, :, :H].set(w4)
                .reshape(r, 4 * Hp))

    wih_p = pad_gates(w_ih.T.astype(jnp.float32))                            # (I, 4Hp)
    whh_p = (jnp.zeros((Hp, 4 * Hp), jnp.float32)
             .at[:H, :].set(pad_gates(w_hh.T.astype(jnp.float32))))          # (Hp, 4Hp)
    b4 = (b_ih + b_hh).astype(jnp.float32).reshape(4, H)[order, :]
    b_p = (jnp.zeros((4, Hp), jnp.float32).at[:, :H].set(b4)
           .reshape(1, 4 * Hp))                                              # (1, 4Hp)
    wfc_p = (jnp.zeros((Hp, Op), jnp.float32)
             .at[:H, :O].set(w_fc.T.astype(jnp.float32)))                    # (Hp, Op)
    bfc_p = (jnp.zeros((1, Op), jnp.float32)
             .at[0, :O].set(b_fc.astype(jnp.float32)))                       # (1, Op)

    # Batch-pad with zero rows and go time-major in the wrapper (tiny one-time
    # XLA transpose, off the serial path); row index in x_tm = t*Bp + b.
    xp = jnp.zeros((Bp, S, I), jnp.float32).at[:B].set(x.astype(jnp.float32))
    x_tm = jnp.transpose(xp, (1, 0, 2)).reshape(S * Bp, I)

    out_p = pl.pallas_call(
        lstm_kernel,
        out_shape=jax.ShapeDtypeStruct((Bp, Op), jnp.float32),
        in_specs=[pl.BlockSpec(memory_space=pltpu.MemorySpace.VMEM)] * 6,
        out_specs=pl.BlockSpec(memory_space=pltpu.MemorySpace.VMEM),
        scratch_shapes=[pltpu.VMEM((S * Bp, 4 * Hp), jnp.float32)],
    )(x_tm, wih_p, whh_p, b_p, wfc_p, bfc_p)

    return out_p[:B, :O]


def init_params(key, input_dim, hidden_dim, output_dim):
    """Deterministic synthetic parameters in PyTorch nn.LSTM / nn.Linear layout."""
    k = jax.random.split(key, 6)
    bound = 1.0 / float(jnp.sqrt(hidden_dim))
    w_ih = jax.random.uniform(k[0], (4 * hidden_dim, input_dim),
                              jnp.float32, -bound, bound)
    w_hh = jax.random.uniform(k[1], (4 * hidden_dim, hidden_dim),
                              jnp.float32, -bound, bound)
    b_ih = jax.random.uniform(k[2], (4 * hidden_dim,), jnp.float32, -bound, bound)
    b_hh = jax.random.uniform(k[3], (4 * hidden_dim,), jnp.float32, -bound, bound)
    w_fc = jax.random.uniform(k[4], (output_dim, hidden_dim),
                              jnp.float32, -bound, bound)
    b_fc = jax.random.uniform(k[5], (output_dim,), jnp.float32, -bound, bound)
    return (w_ih, w_hh, b_ih, b_hh, w_fc, b_fc)


def reference_forward(x, w_ih, w_hh, b_ih, b_hh, w_fc, b_fc):
    """Pure-JAX reference with the raw (unpadded) params — same math as PyTorch."""
    B, S, I = x.shape
    H = w_hh.shape[1]

    def step(carry, x_t):
        h, c = carry
        gates = x_t @ w_ih.T + h @ w_hh.T + b_ih + b_hh
        i = jax.nn.sigmoid(gates[:, 0 * H:1 * H])
        f = jax.nn.sigmoid(gates[:, 1 * H:2 * H])
        g = jnp.tanh(gates[:, 2 * H:3 * H])
        o = jax.nn.sigmoid(gates[:, 3 * H:4 * H])
        c = f * c + i * g
        h = o * jnp.tanh(c)
        return (h, c), None

    h0 = jnp.zeros((B, H), jnp.float32)
    c0 = jnp.zeros((B, H), jnp.float32)
    (h, _), _ = jax.lax.scan(step, (h0, c0), jnp.transpose(x, (1, 0, 2)))
    return h @ w_fc.T + b_fc


if __name__ == "__main__":
    batch, seq, input_dim, hidden_dim, output_dim = 4, 8, 4, 32, 1

    key = jax.random.PRNGKey(0)
    kx, kp = jax.random.split(key)
    x = jax.random.normal(kx, (batch, seq, input_dim), jnp.float32)
    params = init_params(kp, input_dim, hidden_dim, output_dim)

    out = simple_lstm_forward(x, *params)
    out = jax.block_until_ready(out)

    ref = reference_forward(x, *params)
    assert out.shape == (batch, output_dim)
    assert jnp.allclose(out, ref, atol=1e-5, rtol=1e-5), (out, ref)

    print("KERNEL_OK")
</pallas_src>

<mosaic_0001>
module attributes {stable_mosaic.version = 11 : i64} {
  func.func @lstm_kernel(%arg0: memref<64x4xf32, #tpu.memory_space<vmem>>, %arg1: memref<4x512xf32, #tpu.memory_space<vmem>>, %arg2: memref<128x512xf32, #tpu.memory_space<vmem>>, %arg3: memref<1x512xf32, #tpu.memory_space<vmem>>, %arg4: memref<128x128xf32, #tpu.memory_space<vmem>>, %arg5: memref<1x128xf32, #tpu.memory_space<vmem>>, %arg6: memref<8x128xf32, #tpu.memory_space<vmem>>, %arg7: memref<64x512xf32, #tpu.memory_space<vmem>>) attributes {dimension_semantics = [], scalar_prefetch = 0 : i64, scratch_operands = 1 : i64, tpu.core_type = #tpu.core_type<tc>} {
    %c0 = arith.constant 0 : index
    %c0_0 = arith.constant 0 : index
    %0 = vector.load %arg0[%c0, %c0_0] : memref<64x4xf32, #tpu.memory_space<vmem>>, vector<64x4xf32>
    %c0_1 = arith.constant 0 : index
    %c0_2 = arith.constant 0 : index
    %1 = vector.load %arg1[%c0_1, %c0_2] : memref<4x512xf32, #tpu.memory_space<vmem>>, vector<4x512xf32>
    %cst = arith.constant dense<0.000000e+00> : vector<64x512xf32>
    %2 = tpu.matmul %0, %1, %cst {dimension_numbers = #tpu.dot_dimension_numbers<[1], [0], [0], [1], [0, 0, 1, 1], [], []>} : vector<64x4xf32>, vector<4x512xf32>, vector<64x512xf32> -> vector<64x512xf32>
    %c0_3 = arith.constant 0 : index
    %c0_4 = arith.constant 0 : index
    %3 = vector.load %arg3[%c0_3, %c0_4] : memref<1x512xf32, #tpu.memory_space<vmem>>, vector<1x512xf32>
    %4 = vector.broadcast %3 : vector<1x512xf32> to vector<64x512xf32>
    %5 = arith.addf %2, %4 : vector<64x512xf32>
    %c0_5 = arith.constant 0 : index
    %c0_6 = arith.constant 0 : index
    %6 = vector.load %arg7[%c0_5, %c0_6] : memref<64x512xf32, #tpu.memory_space<vmem>>, vector<64x512xf32>
    tpu.vector_store %arg7[%c0_5, %c0_6], %5 {strides = array<i32>} : memref<64x512xf32, #tpu.memory_space<vmem>>, vector<64x512xf32>,
    %cst_7 = arith.constant 0.000000e+00 : f32
    %7 = vector.broadcast %cst_7 : f32 to vector<8x128xf32>
    %cst_8 = arith.constant 0.000000e+00 : f32
    %8 = vector.broadcast %cst_8 : f32 to vector<8x128xf32>
    %c0_i32 = arith.constant 0 : i32
    %c8_i32 = arith.constant 8 : i32
    %9 = arith.muli %c0_i32, %c8_i32 : i32
    %10 = tpu.assume_multiple %9, 8 : i32
    %11 = arith.index_cast %10 : i32 to index
    %c0_9 = arith.constant 0 : index
    %12 = vector.load %arg7[%11, %c0_9] : memref<64x512xf32, #tpu.memory_space<vmem>>, vector<8x512xf32>
    %c0_10 = arith.constant 0 : index
    %c0_11 = arith.constant 0 : index
    %13 = vector.load %arg2[%c0_10, %c0_11] : memref<128x512xf32, #tpu.memory_space<vmem>>, vector<128x512xf32>
    %cst_12 = arith.constant dense<0.000000e+00> : vector<8x512xf32>
    %14 = tpu.matmul %7, %13, %cst_12 {dimension_numbers = #tpu.dot_dimension_numbers<[1], [0], [0], [1], [0, 0, 1, 1], [], []>} : vector<8x128xf32>, vector<128x512xf32>, vector<8x512xf32> -> vector<8x512xf32>
    %15 = arith.addf %12, %14 : vector<8x512xf32>
    %16 = vector.extract_strided_slice %15 {offsets = [0, 0], sizes = [8, 384], strides = [1, 1]} : vector<8x512xf32> to vector<8x384xf32>
    %17 = arith.negf %16 : vector<8x384xf32>
    %18 = math.exp %17 : vector<8x384xf32>
    %cst_13 = arith.constant 1.000000e+00 : f32
    %19 = vector.broadcast %cst_13 : f32 to vector<8x384xf32>
    %20 = arith.addf %19, %18 : vector<8x384xf32>
    %21 = arith.divf %19, %20 : vector<8x384xf32>
    %22 = vector.extract_strided_slice %21 {offsets = [0, 0], sizes = [8, 128], strides = [1, 1]} : vector<8x384xf32> to vector<8x128xf32>
    %23 = vector.extract_strided_slice %21 {offsets = [0, 128], sizes = [8, 128], strides = [1, 1]} : vector<8x384xf32> to vector<8x128xf32>
    %24 = vector.extract_strided_slice %21 {offsets = [0, 256], sizes = [8, 128], strides = [1, 1]} : vector<8x384xf32> to vector<8x128xf32>
    %25 = vector.extract_strided_slice %15 {offsets = [0, 384], sizes = [8, 128], strides = [1, 1]} : vector<8x512xf32> to vector<8x128xf32>
    %26 = math.tanh %25 : vector<8x128xf32>
    %27 = arith.mulf %23, %8 : vector<8x128xf32>
    %28 = arith.mulf %22, %26 : vector<8x128xf32>
    %29 = arith.addf %27, %28 : vector<8x128xf32>
    %30 = math.tanh %29 : vector<8x128xf32>
    %31 = arith.mulf %24, %30 : vector<8x128xf32>
    %c1_i32 = arith.constant 1 : i32
    %c8_i32_14 = arith.constant 8 : i32
    %32 = arith.muli %c1_i32, %c8_i32_14 : i32
    %33 = tpu.assume_multiple %32, 8 : i32
    %34 = arith.index_cast %33 : i32 to index
    %c0_15 = arith.constant 0 : index
    %35 = vector.load %arg7[%34, %c0_15] : memref<64x512xf32, #tpu.memory_space<vmem>>, vector<8x512xf32>
    %c0_16 = arith.constant 0 : index
    %c0_17 = arith.constant 0 : index
    %36 = vector.load %arg2[%c0_16, %c0_17] : memref<128x512xf32, #tpu.memory_space<vmem>>, vector<128x512xf32>
    %cst_18 = arith.constant dense<0.000000e+00> : vector<8x512xf32>
    %37 = tpu.matmul %31, %36, %cst_18 {dimension_numbers = #tpu.dot_dimension_numbers<[1], [0], [0], [1], [0, 0, 1, 1], [], []>} : vector<8x128xf32>, vector<128x512xf32>, vector<8x512xf32> -> vector<8x512xf32>
    %38 = arith.addf %35, %37 : vector<8x512xf32>
    %39 = vector.extract_strided_slice %38 {offsets = [0, 0], sizes = [8, 384], strides = [1, 1]} : vector<8x512xf32> to vector<8x384xf32>
    %40 = arith.negf %39 : vector<8x384xf32>
    %41 = math.exp %40 : vector<8x384xf32>
    %cst_19 = arith.constant 1.000000e+00 : f32
    %42 = vector.broadcast %cst_19 : f32 to vector<8x384xf32>
    %43 = arith.addf %42, %41 : vector<8x384xf32>
    %44 = arith.divf %42, %43 : vector<8x384xf32>
    %45 = vector.extract_strided_slice %44 {offsets = [0, 0], sizes = [8, 128], strides = [1, 1]} : vector<8x384xf32> to vector<8x128xf32>
    %46 = vector.extract_strided_slice %44 {offsets = [0, 128], sizes = [8, 128], strides = [1, 1]} : vector<8x384xf32> to vector<8x128xf32>
    %47 = vector.extract_strided_slice %44 {offsets = [0, 256], sizes = [8, 128], strides = [1, 1]} : vector<8x384xf32> to vector<8x128xf32>
    %48 = vector.extract_strided_slice %38 {offsets = [0, 384], sizes = [8, 128], strides = [1, 1]} : vector<8x512xf32> to vector<8x128xf32>
    %49 = math.tanh %48 : vector<8x128xf32>
    %50 = arith.mulf %46, %29 : vector<8x128xf32>
    %51 = arith.mulf %45, %49 : vector<8x128xf32>
    %52 = arith.addf %50, %51 : vector<8x128xf32>
    %53 = math.tanh %52 : vector<8x128xf32>
    %54 = arith.mulf %47, %53 : vector<8x128xf32>
    %c2_i32 = arith.constant 2 : i32
    %c8_i32_20 = arith.constant 8 : i32
    %55 = arith.muli %c2_i32, %c8_i32_20 : i32
    %56 = tpu.assume_multiple %55, 8 : i32
    %57 = arith.index_cast %56 : i32 to index
    %c0_21 = arith.constant 0 : index
    %58 = vector.load %arg7[%57, %c0_21] : memref<64x512xf32, #tpu.memory_space<vmem>>, vector<8x512xf32>
    %c0_22 = arith.constant 0 : index
    %c0_23 = arith.constant 0 : index
    %59 = vector.load %arg2[%c0_22, %c0_23] : memref<128x512xf32, #tpu.memory_space<vmem>>, vector<128x512xf32>
    %cst_24 = arith.constant dense<0.000000e+00> : vector<8x512xf32>
    %60 = tpu.matmul %54, %59, %cst_24 {dimension_numbers = #tpu.dot_dimension_numbers<[1], [0], [0], [1], [0, 0, 1, 1], [], []>} : vector<8x128xf32>, vector<128x512xf32>, vector<8x512xf32> -> vector<8x512xf32>
    %61 = arith.addf %58, %60 : vector<8x512xf32>
    %62 = vector.extract_strided_slice %61 {offsets = [0, 0], sizes = [8, 384], strides = [1, 1]} : vector<8x512xf32> to vector<8x384xf32>
    %63 = arith.negf %62 : vector<8x384xf32>
    %64 = math.exp %63 : vector<8x384xf32>
    %cst_25 = arith.constant 1.000000e+00 : f32
    %65 = vector.broadcast %cst_25 : f32 to vector<8x384xf32>
    %66 = arith.addf %65, %64 : vector<8x384xf32>
    %67 = arith.divf %65, %66 : vector<8x384xf32>
    %68 = vector.extract_strided_slice %67 {offsets = [0, 0], sizes = [8, 128], strides = [1, 1]} : vector<8x384xf32> to vector<8x128xf32>
    %69 = vector.extract_strided_slice %67 {offsets = [0, 128], sizes = [8, 128], strides = [1, 1]} : vector<8x384xf32> to vector<8x128xf32>
    %70 = vector.extract_strided_slice %67 {offsets = [0, 256], sizes = [8, 128], strides = [1, 1]} : vector<8x384xf32> to vector<8x128xf32>
    %71 = vector.extract_strided_slice %61 {offsets = [0, 384], sizes = [8, 128], strides = [1, 1]} : vector<8x512xf32> to vector<8x128xf32>
    %72 = math.tanh %71 : vector<8x128xf32>
    %73 = arith.mulf %69, %52 : vector<8x128xf32>
    %74 = arith.mulf %68, %72 : vector<8x128xf32>
    %75 = arith.addf %73, %74 : vector<8x128xf32>
    %76 = math.tanh %75 : vector<8x128xf32>
    %77 = arith.mulf %70, %76 : vector<8x128xf32>
    %c3_i32 = arith.constant 3 : i32
    %c8_i32_26 = arith.constant 8 : i32
    %78 = arith.muli %c3_i32, %c8_i32_26 : i32
    %79 = tpu.assume_multiple %78, 8 : i32
    %80 = arith.index_cast %79 : i32 to index
    %c0_27 = arith.constant 0 : index
    %81 = vector.load %arg7[%80, %c0_27] : memref<64x512xf32, #tpu.memory_space<vmem>>, vector<8x512xf32>
    %c0_28 = arith.constant 0 : index
    %c0_29 = arith.constant 0 : index
    %82 = vector.load %arg2[%c0_28, %c0_29] : memref<128x512xf32, #tpu.memory_space<vmem>>, vector<128x512xf32>
    %cst_30 = arith.constant dense<0.000000e+00> : vector<8x512xf32>
    %83 = tpu.matmul %77, %82, %cst_30 {dimension_numbers = #tpu.dot_dimension_numbers<[1], [0], [0], [1], [0, 0, 1, 1], [], []>} : vector<8x128xf32>, vector<128x512xf32>, vector<8x512xf32> -> vector<8x512xf32>
    %84 = arith.addf %81, %83 : vector<8x512xf32>
    %85 = vector.extract_strided_slice %84 {offsets = [0, 0], sizes = [8, 384], strides = [1, 1]} : vector<8x512xf32> to vector<8x384xf32>
    %86 = arith.negf %85 : vector<8x384xf32>
    %87 = math.exp %86 : vector<8x384xf32>
    %cst_31 = arith.constant 1.000000e+00 : f32
    %88 = vector.broadcast %cst_31 : f32 to vector<8x384xf32>
    %89 = arith.addf %88, %87 : vector<8x384xf32>
    %90 = arith.divf %88, %89 : vector<8x384xf32>
    %91 = vector.extract_strided_slice %90 {offsets = [0, 0], sizes = [8, 128], strides = [1, 1]} : vector<8x384xf32> to vector<8x128xf32>
    %92 = vector.extract_strided_slice %90 {offsets = [0, 128], sizes = [8, 128], strides = [1, 1]} : vector<8x384xf32> to vector<8x128xf32>
    %93 = vector.extract_strided_slice %90 {offsets = [0, 256], sizes = [8, 128], strides = [1, 1]} : vector<8x384xf32> to vector<8x128xf32>
    %94 = vector.extract_strided_slice %84 {offsets = [0, 384], sizes = [8, 128], strides = [1, 1]} : vector<8x512xf32> to vector<8x128xf32>
    %95 = math.tanh %94 : vector<8x128xf32>
    %96 = arith.mulf %92, %75 : vector<8x128xf32>
    %97 = arith.mulf %91, %95 : vector<8x128xf32>
    %98 = arith.addf %96, %97 : vector<8x128xf32>
    %99 = math.tanh %98 : vector<8x128xf32>
    %100 = arith.mulf %93, %99 : vector<8x128xf32>
    %c4_i32 = arith.constant 4 : i32
    %c8_i32_32 = arith.constant 8 : i32
    %101 = arith.muli %c4_i32, %c8_i32_32 : i32
    %102 = tpu.assume_multiple %101, 8 : i32
    %103 = arith.index_cast %102 : i32 to index
    %c0_33 = arith.constant 0 : index
    %104 = vector.load %arg7[%103, %c0_33] : memref<64x512xf32, #tpu.memory_space<vmem>>, vector<8x512xf32>
    %c0_34 = arith.constant 0 : index
    %c0_35 = arith.constant 0 : index
    %105 = vector.load %arg2[%c0_34, %c0_35] : memref<128x512xf32, #tpu.memory_space<vmem>>, vector<128x512xf32>
    %cst_36 = arith.constant dense<0.000000e+00> : vector<8x512xf32>
    %106 = tpu.matmul %100, %105, %cst_36 {dimension_numbers = #tpu.dot_dimension_numbers<[1], [0], [0], [1], [0, 0, 1, 1], [], []>} : vector<8x128xf32>, vector<128x512xf32>, vector<8x512xf32> -> vector<8x512xf32>
    %107 = arith.addf %104, %106 : vector<8x512xf32>
    %108 = vector.extract_strided_slice %107 {offsets = [0, 0], sizes = [8, 384], strides = [1, 1]} : vector<8x512xf32> to vector<8x384xf32>
    %109 = arith.negf %108 : vector<8x384xf32>
    %110 = math.exp %109 : vector<8x384xf32>
    %cst_37 = arith.constant 1.000000e+00 : f32
    %111 = vector.broadcast %cst_37 : f32 to vector<8x384xf32>
    %112 = arith.addf %111, %110 : vector<8x384xf32>
    %113 = arith.divf %111, %112 : vector<8x384xf32>
    %114 = vector.extract_strided_slice %113 {offsets = [0, 0], sizes = [8, 128], strides = [1, 1]} : vector<8x384xf32> to vector<8x128xf32>
    %115 = vector.extract_strided_slice %113 {offsets = [0, 128], sizes = [8, 128], strides = [1, 1]} : vector<8x384xf32> to vector<8x128xf32>
    %116 = vector.extract_strided_slice %113 {offsets = [0, 256], sizes = [8, 128], strides = [1, 1]} : vector<8x384xf32> to vector<8x128xf32>
    %117 = vector.extract_strided_slice %107 {offsets = [0, 384], sizes = [8, 128], strides = [1, 1]} : vector<8x512xf32> to vector<8x128xf32>
    %118 = math.tanh %117 : vector<8x128xf32>
    %119 = arith.mulf %115, %98 : vector<8x128xf32>
    %120 = arith.mulf %114, %118 : vector<8x128xf32>
    %121 = arith.addf %119, %120 : vector<8x128xf32>
    %122 = math.tanh %121 : vector<8x128xf32>
    %123 = arith.mulf %116, %122 : vector<8x128xf32>
    %c5_i32 = arith.constant 5 : i32
    %c8_i32_38 = arith.constant 8 : i32
    %124 = arith.muli %c5_i32, %c8_i32_38 : i32
    %125 = tpu.assume_multiple %124, 8 : i32
    %126 = arith.index_cast %125 : i32 to index
    %c0_39 = arith.constant 0 : index
    %127 = vector.load %arg7[%126, %c0_39] : memref<64x512xf32, #tpu.memory_space<vmem>>, vector<8x512xf32>
    %c0_40 = arith.constant 0 : index
    %c0_41 = arith.constant 0 : index
    %128 = vector.load %arg2[%c0_40, %c0_41] : memref<128x512xf32, #tpu.memory_space<vmem>>, vector<128x512xf32>
    %cst_42 = arith.constant dense<0.000000e+00> : vector<8x512xf32>
    %129 = tpu.matmul %123, %128, %cst_42 {dimension_numbers = #tpu.dot_dimension_numbers<[1], [0], [0], [1], [0, 0, 1, 1], [], []>} : vector<8x128xf32>, vector<128x512xf32>, vector<8x512xf32> -> vector<8x512xf32>
    %130 = arith.addf %127, %129 : vector<8x512xf32>
    %131 = vector.extract_strided_slice %130 {offsets = [0, 0], sizes = [8, 384], strides = [1, 1]} : vector<8x512xf32> to vector<8x384xf32>
    %132 = arith.negf %131 : vector<8x384xf32>
    %133 = math.exp %132 : vector<8x384xf32>
    %cst_43 = arith.constant 1.000000e+00 : f32
    %134 = vector.broadcast %cst_43 : f32 to vector<8x384xf32>
    %135 = arith.addf %134, %133 : vector<8x384xf32>
    %136 = arith.divf %134, %135 : vector<8x384xf32>
    %137 = vector.extract_strided_slice %136 {offsets = [0, 0], sizes = [8, 128], strides = [1, 1]} : vector<8x384xf32> to vector<8x128xf32>
    %138 = vector.extract_strided_slice %136 {offsets = [0, 128], sizes = [8, 128], strides = [1, 1]} : vector<8x384xf32> to vector<8x128xf32>
    %139 = vector.extract_strided_slice %136 {offsets = [0, 256], sizes = [8, 128], strides = [1, 1]} : vector<8x384xf32> to vector<8x128xf32>
    %140 = vector.extract_strided_slice %130 {offsets = [0, 384], sizes = [8, 128], strides = [1, 1]} : vector<8x512xf32> to vector<8x128xf32>
    %141 = math.tanh %140 : vector<8x128xf32>
    %142 = arith.mulf %138, %121 : vector<8x128xf32>
    %143 = arith.mulf %137, %141 : vector<8x128xf32>
    %144 = arith.addf %142, %143 : vector<8x128xf32>
    %145 = math.tanh %144 : vector<8x128xf32>
    %146 = arith.mulf %139, %145 : vector<8x128xf32>
    %c6_i32 = arith.constant 6 : i32
    %c8_i32_44 = arith.constant 8 : i32
    %147 = arith.muli %c6_i32, %c8_i32_44 : i32
    %148 = tpu.assume_multiple %147, 8 : i32
    %149 = arith.index_cast %148 : i32 to index
    %c0_45 = arith.constant 0 : index
    %150 = vector.load %arg7[%149, %c0_45] : memref<64x512xf32, #tpu.memory_space<vmem>>, vector<8x512xf32>
    %c0_46 = arith.constant 0 : index
    %c0_47 = arith.constant 0 : index
    %151 = vector.load %arg2[%c0_46, %c0_47] : memref<128x512xf32, #tpu.memory_space<vmem>>, vector<128x512xf32>
    %cst_48 = arith.constant dense<0.000000e+00> : vector<8x512xf32>
    %152 = tpu.matmul %146, %151, %cst_48 {dimension_numbers = #tpu.dot_dimension_numbers<[1], [0], [0], [1], [0, 0, 1, 1], [], []>} : vector<8x128xf32>, vector<128x512xf32>, vector<8x512xf32> -> vector<8x512xf32>
    %153 = arith.addf %150, %152 : vector<8x512xf32>
    %154 = vector.extract_strided_slice %153 {offsets = [0, 0], sizes = [8, 384], strides = [1, 1]} : vector<8x512xf32> to vector<8x384xf32>
    %155 = arith.negf %154 : vector<8x384xf32>
    %156 = math.exp %155 : vector<8x384xf32>
    %cst_49 = arith.constant 1.000000e+00 : f32
    %157 = vector.broadcast %cst_49 : f32 to vector<8x384xf32>
    %158 = arith.addf %157, %156 : vector<8x384xf32>
    %159 = arith.divf %157, %158 : vector<8x384xf32>
    %160 = vector.extract_strided_slice %159 {offsets = [0, 0], sizes = [8, 128], strides = [1, 1]} : vector<8x384xf32> to vector<8x128xf32>
    %161 = vector.extract_strided_slice %159 {offsets = [0, 128], sizes = [8, 128], strides = [1, 1]} : vector<8x384xf32> to vector<8x128xf32>
    %162 = vector.extract_strided_slice %159 {offsets = [0, 256], sizes = [8, 128], strides = [1, 1]} : vector<8x384xf32> to vector<8x128xf32>
    %163 = vector.extract_strided_slice %153 {offsets = [0, 384], sizes = [8, 128], strides = [1, 1]} : vector<8x512xf32> to vector<8x128xf32>
    %164 = math.tanh %163 : vector<8x128xf32>
    %165 = arith.mulf %161, %144 : vector<8x128xf32>
    %166 = arith.mulf %160, %164 : vector<8x128xf32>
    %167 = arith.addf %165, %166 : vector<8x128xf32>
    %168 = math.tanh %167 : vector<8x128xf32>
    %169 = arith.mulf %162, %168 : vector<8x128xf32>
    %c7_i32 = arith.constant 7 : i32
    %c8_i32_50 = arith.constant 8 : i32
    %170 = arith.muli %c7_i32, %c8_i32_50 : i32
    %171 = tpu.assume_multiple %170, 8 : i32
    %172 = arith.index_cast %171 : i32 to index
    %c0_51 = arith.constant 0 : index
    %173 = vector.load %arg7[%172, %c0_51] : memref<64x512xf32, #tpu.memory_space<vmem>>, vector<8x512xf32>
    %c0_52 = arith.constant 0 : index
    %c0_53 = arith.constant 0 : index
    %174 = vector.load %arg2[%c0_52, %c0_53] : memref<128x512xf32, #tpu.memory_space<vmem>>, vector<128x512xf32>
    %cst_54 = arith.constant dense<0.000000e+00> : vector<8x512xf32>
    %175 = tpu.matmul %169, %174, %cst_54 {dimension_numbers = #tpu.dot_dimension_numbers<[1], [0], [0], [1], [0, 0, 1, 1], [], []>} : vector<8x128xf32>, vector<128x512xf32>, vector<8x512xf32> -> vector<8x512xf32>
    %176 = arith.addf %173, %175 : vector<8x512xf32>
    %177 = vector.extract_strided_slice %176 {offsets = [0, 0], sizes = [8, 384], strides = [1, 1]} : vector<8x512xf32> to vector<8x384xf32>
    %178 = arith.negf %177 : vector<8x384xf32>
    %179 = math.exp %178 : vector<8x384xf32>
    %cst_55 = arith.constant 1.000000e+00 : f32
    %180 = vector.broadcast %cst_55 : f32 to vector<8x384xf32>
    %181 = arith.addf %180, %179 : vector<8x384xf32>
    %182 = arith.divf %180, %181 : vector<8x384xf32>
    %183 = vector.extract_strided_slice %182 {offsets = [0, 0], sizes = [8, 128], strides = [1, 1]} : vector<8x384xf32> to vector<8x128xf32>
    %184 = vector.extract_strided_slice %182 {offsets = [0, 128], sizes = [8, 128], strides = [1, 1]} : vector<8x384xf32> to vector<8x128xf32>
    %185 = vector.extract_strided_slice %182 {offsets = [0, 256], sizes = [8, 128], strides = [1, 1]} : vector<8x384xf32> to vector<8x128xf32>
    %186 = vector.extract_strided_slice %176 {offsets = [0, 384], sizes = [8, 128], strides = [1, 1]} : vector<8x512xf32> to vector<8x128xf32>
    %187 = math.tanh %186 : vector<8x128xf32>
    %188 = arith.mulf %184, %167 : vector<8x128xf32>
    %189 = arith.mulf %183, %187 : vector<8x128xf32>
    %190 = arith.addf %188, %189 : vector<8x128xf32>
    %191 = math.tanh %190 : vector<8x128xf32>
    %192 = arith.mulf %185, %191 : vector<8x128xf32>
    %c8_i32_56 = arith.constant 8 : i32
    %c0_57 = arith.constant 0 : index
    %c0_58 = arith.constant 0 : index
    %193 = vector.load %arg4[%c0_57, %c0_58] : memref<128x128xf32, #tpu.memory_space<vmem>>, vector<128x128xf32>
    %cst_59 = arith.constant dense<0.000000e+00> : vector<8x128xf32>
    %194 = tpu.matmul %192, %193, %cst_59 {dimension_numbers = #tpu.dot_dimension_numbers<[1], [0], [0], [1], [0, 0, 1, 1], [], []>} : vector<8x128xf32>, vector<128x128xf32>, vector<8x128xf32> -> vector<8x128xf32>
    %c0_60 = arith.constant 0 : index
    %c0_61 = arith.constant 0 : index
    %195 = vector.load %arg5[%c0_60, %c0_61] : memref<1x128xf32, #tpu.memory_space<vmem>>, vector<1x128xf32>
    %196 = vector.broadcast %195 : vector<1x128xf32> to vector<8x128xf32>
    %197 = arith.addf %194, %196 : vector<8x128xf32>
    %c0_62 = arith.constant 0 : index
    %c0_63 = arith.constant 0 : index
    %198 = vector.load %arg6[%c0_62, %c0_63] : memref<8x128xf32, #tpu.memory_space<vmem>>, vector<8x128xf32>
    tpu.vector_store %arg6[%c0_62, %c0_63], %197 {strides = array<i32>} : memref<8x128xf32, #tpu.memory_space<vmem>>, vector<8x128xf32>,
    return
  }
}

</mosaic_0001>

<llo_original>
// kernel: simple_lstm_forward.1
$region0: #{simple_lstm_forward.1}
  #allocation0 [shape = 'u32[]', space=smem, size = 0x4, offset = 0x4, fixed_abs, tag = 'smem constant byte address 0x4 - core index']
  #allocation1 [shape = 'u32[144,128]{1,0:T(1,128)}', space=vmem, size = 0x12000, scoped, tag = 'internal scratch']
  #allocation2 [shape = 'f32[64,512]{1,0:T(8,128)}', space=vmem, size = 0x20000, scoped, tag = 'scratch operand']
  %s0 = inlined_call_operand.vmem [shape: f32[64,4], index: 0, kind: input, shape index: {}]
  %s1 = inlined_call_operand.vmem [shape: f32[4,512], index: 1, kind: input, shape index: {}]
  %s2 = inlined_call_operand.vmem [shape: f32[128,512], index: 2, kind: input, shape index: {}]
  %s3 = inlined_call_operand.vmem [shape: f32[1,512], index: 3, kind: input, shape index: {}]
  %s4 = inlined_call_operand.vmem [shape: f32[128,128], index: 4, kind: input, shape index: {}]
  %s5 = inlined_call_operand.vmem [shape: f32[1,128], index: 5, kind: input, shape index: {}]
  %s6 = inlined_call_operand.vmem [shape: f32[8,128], index: 6, kind: output, shape index: {}]
  %s7 = sld [smem:[#allocation0]]
  $region34: #{simple_lstm_forward.1} parent=0
    _
  %s9 = ssub.s32 1, %s7
  %s10 = scalar_select 0, %s9, %s7
  // Predicated region
  $region2: #{simple_lstm_forward.1} parent=0 // pred_check
    _
  $region3: #{simple_lstm_forward.1} parent=0 // pred_check_branch
    %12 = sbr.rel (0) target = $region5
  $region4: #{simple_lstm_forward.1} parent=0 // pred_region
    _
  $region5: #{simple_lstm_forward.1} parent=0 // pred_fallthru
    _
  // Predicated region
  $region6: #{simple_lstm_forward.1} parent=0 // pred_check
    _
  $region7: #{simple_lstm_forward.1} parent=0 // pred_check_branch
    %14 = sbr.rel (0) target = $region9
  $region8: #{simple_lstm_forward.1} parent=0 // pred_region
    _
  $region9: #{simple_lstm_forward.1} parent=0 // pred_fallthru
    _
  // Predicated region
  $region10: #{simple_lstm_forward.1} parent=0 // pred_check
    _
  $region11: #{simple_lstm_forward.1} parent=0 // pred_check_branch
    %16 = sbr.rel (0) target = $region13
  $region12: #{simple_lstm_forward.1} parent=0 // pred_region
    _
  $region13: #{simple_lstm_forward.1} parent=0 // pred_fallthru
    _
  // Predicated region
  $region14: #{simple_lstm_forward.1} parent=0 // pred_check
    _
  $region15: #{simple_lstm_forward.1} parent=0 // pred_check_branch
    %18 = sbr.rel (0) target = $region17
  $region16: #{simple_lstm_forward.1} parent=0 // pred_region
    _
  $region17: #{simple_lstm_forward.1} parent=0 // pred_fallthru
    _
  // Predicated region
  $region18: #{simple_lstm_forward.1} parent=0 // pred_check
    _
  $region19: #{simple_lstm_forward.1} parent=0 // pred_check_branch
    %20 = sbr.rel (0) target = $region21
  $region20: #{simple_lstm_forward.1} parent=0 // pred_region
    _
  $region21: #{simple_lstm_forward.1} parent=0 // pred_fallthru
    _
  // Predicated region
  $region22: #{simple_lstm_forward.1} parent=0 // pred_check
    _
  $region23: #{simple_lstm_forward.1} parent=0 // pred_check_branch
    %22 = sbr.rel (0) target = $region25
  $region24: #{simple_lstm_forward.1} parent=0 // pred_region
    _
  $region25: #{simple_lstm_forward.1} parent=0 // pred_fallthru
    _
  %v23 = vld [vmem:[%s0] sm:$0xff]
  %v24 = vld [vmem:[%s0 + $0x8] sm:$0xff]
  %v25 = vld [vmem:[%s0 + $0x10] sm:$0xff]
  %v26 = vld [vmem:[%s0 + $0x18] sm:$0xff]
  %v27 = vld [vmem:[%s0 + $0x20] sm:$0xff]
  %v28 = vld [vmem:[%s0 + $0x28] sm:$0xff]
  %v29 = vld [vmem:[%s0 + $0x30] sm:$0xff]
  %v30 = vld [vmem:[%s0 + $0x38] sm:$0xff]
  %v31 = vld [vmem:[%s1] sm:$0xff]
  %v32 = vld [vmem:[%s1 + $0x8] sm:$0xff]
  %v33 = vld [vmem:[%s3] sm:$0xf]
  %v35 = vlaneseq
  %v36 = vshrl.u32 %v35, 7
  %v37 = vsub.s32 0, %v36
  %v38 = vrot.slane %v33, %v37
  %v39 = vlaneseq
  %v40 = vshrl.u32 %v39, 7
  %v41 = vsub.s32 1, %v40
  %v42 = vrot.slane %v33, %v41
  %v43 = vlaneseq
  %v44 = vshrl.u32 %v43, 7
  %v45 = vsub.s32 2, %v44
  %v46 = vrot.slane %v33, %v45
  %v47 = vlaneseq
  %v48 = vshrl.u32 %v47, 7
  %v49 = vsub.s32 3, %v48
  %v50 = vrot.slane %v33, %v49
  %v57 = vcombine.high %v31, %v31
  %v58 = vcombine.high %v32, %v32
  %vm59 = vcmask 31744
  %v61 = vsel %vm59, %v23, 0
  %v64 = vsel %vm59, %v24, 0
  %v67 = vsel %vm59, %v25, 0
  %v70 = vsel %vm59, %v26, 0
  %v73 = vsel %vm59, %v27, 0
  %v76 = vsel %vm59, %v28, 0
  %v79 = vsel %vm59, %v29, 0
  %v82 = vsel %vm59, %v30, 0
  %vm84 = vcmask 1043456
  %v85 = vsel %vm84, %v31, 0
  %v87 = vsel %vm84, %v57, 0
  %v89 = vsel %vm84, %v32, 0
  %v91 = vsel %vm84, %v58, 0
  %93 = vmatprep.subr.mxu0 %v87
  %94 = vmatpush1.msra.mxu0 %v85
  %95 = vmatprep.subr.mxu0 0.0
  %96 = vmatpush1.msra.mxu0 0.0
  %97 = vmatprep.subr.mxu0 0.0
  %98 = vmatpush1.msra.mxu0 0.0
  %99 = vmatprep.subr.mxu0 0.0
  %100 = vmatpush1.msra.mxu0 0.0
  %101 = vmatprep.subr.mxu0 0.0
  %102 = vmatpush1.msra.mxu0 0.0
  %103 = vmatprep.subr.mxu0 0.0
  %104 = vmatpush1.msra.mxu0 0.0
  %105 = vmatprep.subr.mxu0 0.0
  %106 = vmatpush1.msra.mxu0 0.0
  %107 = vmatprep.subr.mxu0 0.0
  %108 = vmatpush1.msra.mxu0 0.0
  %109 = vmatprep.subr.mxu0 0.0
  %110 = vmatpush1.msra.mxu0 0.0
  %111 = vmatprep.subr.mxu0 0.0
  %112 = vmatpush1.msra.mxu0 0.0
  %113 = vmatprep.subr.mxu0 0.0
  %114 = vmatpush1.msra.mxu0 0.0
  %115 = vmatprep.subr.mxu0 0.0
  %116 = vmatpush1.msra.mxu0 0.0
  %117 = vmatprep.subr.mxu0 0.0
  %118 = vmatpush1.msra.mxu0 0.0
  %119 = vmatprep.subr.mxu0 0.0
  %120 = vmatpush1.msra.mxu0 0.0
  %121 = vmatprep.subr.mxu0 0.0
  %122 = vmatpush1.msra.mxu0 0.0
  %123 = vmatprep.subr.mxu0 0.0
  %124 = vmatpush1.msra.mxu0 0.0
  %125 = vmatprep.subr.mxu0 0.0
  %126 = vmatpush1.msra.mxu0 0.0
  %127 = vmatprep.subr.mxu0 0.0
  %128 = vmatpush1.msra.mxu0 0.0
  %129 = vmatprep.subr.mxu0 0.0
  %130 = vmatpush1.msra.mxu0 0.0
  %131 = vmatprep.subr.mxu0 0.0
  %132 = vmatpush1.msra.mxu0 0.0
  %133 = vmatprep.subr.mxu0 0.0
  %134 = vmatpush1.msra.mxu0 0.0
  %135 = vmatprep.subr.mxu0 0.0
  %136 = vmatpush1.msra.mxu0 0.0
  %137 = vmatprep.subr.mxu0 0.0
  %138 = vmatpush1.msra.mxu0 0.0
  %139 = vmatprep.subr.mxu0 0.0
  %140 = vmatpush1.msra.mxu0 0.0
  %141 = vmatprep.subr.mxu0 0.0
  %142 = vmatpush1.msra.mxu0 0.0
  %143 = vmatprep.subr.mxu0 0.0
  %144 = vmatpush1.msra.mxu0 0.0
  %145 = vmatprep.subr.mxu0 0.0
  %146 = vmatpush1.msra.mxu0 0.0
  %147 = vmatprep.subr.mxu0 0.0
  %148 = vmatpush1.msra.mxu0 0.0
  %149 = vmatprep.subr.mxu0 0.0
  %150 = vmatpush1.msra.mxu0 0.0
  %151 = vmatprep.subr.mxu0 0.0
  %152 = vmatpush1.msra.mxu0 0.0
  %153 = vmatprep.subr.mxu0 0.0
  %154 = vmatpush1.msra.mxu0 0.0
  %155 = vmatprep.subr.mxu0 0.0
  %156 = vmatpush1.msra.mxu0 0.0
  %157 = vmatprep.mubr.f32.mxu0 0.0
  %158 = vmatmul.mubr.f32.gmra.mrb[0].mxu0 %v61
  %v159 = vpop.f32.mrb[0].mxu0
  %v160 = vadd.f32 %v38, %v159
  %v161 = vpop.f32.mrb[0].mxu0
  %v162 = vadd.f32 %v42, %v161
  %163 = vmatprep.mubr.f32.mxu0 0.0
  %164 = vmatmul.mubr.f32.gmra.mrb[0].mxu0 %v64
  %v165 = vpop.f32.mrb[0].mxu0
  %v166 = vadd.f32 %v38, %v165
  %v167 = vpop.f32.mrb[0].mxu0
  %v168 = vadd.f32 %v42, %v167
  %169 = vmatprep.mubr.f32.mxu0 0.0
  %170 = vmatmul.mubr.f32.gmra.mrb[0].mxu0 %v67
  %v171 = vpop.f32.mrb[0].mxu0
  %v172 = vadd.f32 %v38, %v171
  %v173 = vpop.f32.mrb[0].mxu0
  %v174 = vadd.f32 %v42, %v173
  %175 = vmatprep.mubr.f32.mxu0 0.0
  %176 = vmatmul.mubr.f32.gmra.mrb[0].mxu0 %v70
  %v177 = vpop.f32.mrb[0].mxu0
  %v178 = vadd.f32 %v38, %v177
  %v179 = vpop.f32.mrb[0].mxu0
  %v180 = vadd.f32 %v42, %v179
  %181 = vmatprep.mubr.f32.mxu0 0.0
  %182 = vmatmul.mubr.f32.gmra.mrb[0].mxu0 %v73
  %v183 = vpop.f32.mrb[0].mxu0
  %v184 = vadd.f32 %v38, %v183
  %v185 = vpop.f32.mrb[0].mxu0
  %v186 = vadd.f32 %v42, %v185
  %187 = vmatprep.mubr.f32.mxu0 0.0
  %188 = vmatmul.mubr.f32.gmra.mrb[0].mxu0 %v76
  %v189 = vpop.f32.mrb[0].mxu0
  %v190 = vadd.f32 %v38, %v189
  %v191 = vpop.f32.mrb[0].mxu0
  %v192 = vadd.f32 %v42, %v191
  %193 = vmatprep.mubr.f32.mxu0 0.0
  %194 = vmatmul.mubr.f32.gmra.mrb[0].mxu0 %v79
  %v195 = vpop.f32.mrb[0].mxu0
  %v196 = vadd.f32 %v38, %v195
  %v197 = vpop.f32.mrb[0].mxu0
  %v198 = vadd.f32 %v42, %v197
  %199 = vmatprep.mubr.f32.mxu0 0.0
  %200 = vmatmul.mubr.f32.gmra.mrb[0].mxu0 %v82
  %v201 = vpop.f32.mrb[0].mxu0
  %v202 = vadd.f32 %v38, %v201
  %v203 = vpop.f32.mrb[0].mxu0
  %v204 = vadd.f32 %v42, %v203
  %205 = vdwg.mxu0
  %206 = vmatprep.subr.mxu0 %v91
  %207 = vmatpush1.msra.mxu0 %v89
  %208 = vmatprep.subr.mxu0 0.0
  %209 = vmatpush1.msra.mxu0 0.0
  %210 = vmatprep.subr.mxu0 0.0
  %211 = vmatpush1.msra.mxu0 0.0
  %212 = vmatprep.subr.mxu0 0.0
  %213 = vmatpush1.msra.mxu0 0.0
  %214 = vmatprep.subr.mxu0 0.0
  %215 = vmatpush1.msra.mxu0 0.0
  %216 = vmatprep.subr.mxu0 0.0
  %217 = vmatpush1.msra.mxu0 0.0
  %218 = vmatprep.subr.mxu0 0.0
  %219 = vmatpush1.msra.mxu0 0.0
  %220 = vmatprep.subr.mxu0 0.0
  %221 = vmatpush1.msra.mxu0 0.0
  %222 = vmatprep.subr.mxu0 0.0
  %223 = vmatpush1.msra.mxu0 0.0
  %224 = vmatprep.subr.mxu0 0.0
  %225 = vmatpush1.msra.mxu0 0.0
  %226 = vmatprep.subr.mxu0 0.0
  %227 = vmatpush1.msra.mxu0 0.0
  %228 = vmatprep.subr.mxu0 0.0
  %229 = vmatpush1.msra.mxu0 0.0
  %230 = vmatprep.subr.mxu0 0.0
  %231 = vmatpush1.msra.mxu0 0.0
  %232 = vmatprep.subr.mxu0 0.0
  %233 = vmatpush1.msra.mxu0 0.0
  %234 = vmatprep.subr.mxu0 0.0
  %235 = vmatpush1.msra.mxu0 0.0
  %236 = vmatprep.subr.mxu0 0.0
  %237 = vmatpush1.msra.mxu0 0.0
  %238 = vmatprep.subr.mxu0 0.0
  %239 = vmatpush1.msra.mxu0 0.0
  %240 = vmatprep.subr.mxu0 0.0
  %241 = vmatpush1.msra.mxu0 0.0
  %242 = vmatprep.subr.mxu0 0.0
  %243 = vmatpush1.msra.mxu0 0.0
  %244 = vmatprep.subr.mxu0 0.0
  %245 = vmatpush1.msra.mxu0 0.0
  %246 = vmatprep.subr.mxu0 0.0
  %247 = vmatpush1.msra.mxu0 0.0
  %248 = vmatprep.subr.mxu0 0.0
  %249 = vmatpush1.msra.mxu0 0.0
  %250 = vmatprep.subr.mxu0 0.0
  %251 = vmatpush1.msra.mxu0 0.0
  %252 = vmatprep.subr.mxu0 0.0
  %253 = vmatpush1.msra.mxu0 0.0
  %254 = vmatprep.subr.mxu0 0.0
  %255 = vmatpush1.msra.mxu0 0.0
  %256 = vmatprep.subr.mxu0 0.0
  %257 = vmatpush1.msra.mxu0 0.0
  %258 = vmatprep.subr.mxu0 0.0
  %259 = vmatpush1.msra.mxu0 0.0
  %260 = vmatprep.subr.mxu0 0.0
  %261 = vmatpush1.msra.mxu0 0.0
  %262 = vmatprep.subr.mxu0 0.0
  %263 = vmatpush1.msra.mxu0 0.0
  %264 = vmatprep.subr.mxu0 0.0
  %265 = vmatpush1.msra.mxu0 0.0
  %266 = vmatprep.subr.mxu0 0.0
  %267 = vmatpush1.msra.mxu0 0.0
  %268 = vmatprep.subr.mxu0 0.0
  %269 = vmatpush1.msra.mxu0 0.0
  %270 = vmatprep.mubr.f32.mxu0 0.0
  %271 = vmatmul.mubr.f32.gmra.mrb[0].mxu0 %v61
  %v272 = vpop.f32.mrb[0].mxu0
  %v273 = vadd.f32 %v46, %v272
  %v274 = vpop.f32.mrb[0].mxu0
  %v275 = vadd.f32 %v50, %v274
  %276 = vmatprep.mubr.f32.mxu0 0.0
  %277 = vmatmul.mubr.f32.gmra.mrb[0].mxu0 %v64
  %v278 = vpop.f32.mrb[0].mxu0
  %v279 = vadd.f32 %v46, %v278
  %v280 = vpop.f32.mrb[0].mxu0
  %v281 = vadd.f32 %v50, %v280
  %282 = vmatprep.mubr.f32.mxu0 0.0
  %283 = vmatmul.mubr.f32.gmra.mrb[0].mxu0 %v67
  %v284 = vpop.f32.mrb[0].mxu0
  %v285 = vadd.f32 %v46, %v284
  %v286 = vpop.f32.mrb[0].mxu0
  %v287 = vadd.f32 %v50, %v286
  %288 = vmatprep.mubr.f32.mxu0 0.0
  %289 = vmatmul.mubr.f32.gmra.mrb[0].mxu0 %v70
  %v290 = vpop.f32.mrb[0].mxu0
  %v291 = vadd.f32 %v46, %v290
  %v292 = vpop.f32.mrb[0].mxu0
  %v293 = vadd.f32 %v50, %v292
  %294 = vmatprep.mubr.f32.mxu0 0.0
  %295 = vmatmul.mubr.f32.gmra.mrb[0].mxu0 %v73
  %v296 = vpop.f32.mrb[0].mxu0
  %v297 = vadd.f32 %v46, %v296
  %v298 = vpop.f32.mrb[0].mxu0
  %v299 = vadd.f32 %v50, %v298
  %300 = vmatprep.mubr.f32.mxu0 0.0
  %301 = vmatmul.mubr.f32.gmra.mrb[0].mxu0 %v76
  %v302 = vpop.f32.mrb[0].mxu0
  %v303 = vadd.f32 %v46, %v302
  %v304 = vpop.f32.mrb[0].mxu0
  %v305 = vadd.f32 %v50, %v304
  %306 = vmatprep.mubr.f32.mxu0 0.0
  %307 = vmatmul.mubr.f32.gmra.mrb[0].mxu0 %v79
  %v308 = vpop.f32.mrb[0].mxu0
  %v309 = vadd.f32 %v46, %v308
  %v310 = vpop.f32.mrb[0].mxu0
  %v311 = vadd.f32 %v50, %v310
  %312 = vmatprep.mubr.f32.mxu0 0.0
  %313 = vmatmul.mubr.f32.gmra.mrb[0].mxu0 %v82
  %v314 = vpop.f32.mrb[0].mxu0
  %v315 = vadd.f32 %v46, %v314
  %v316 = vpop.f32.mrb[0].mxu0
  %v317 = vadd.f32 %v50, %v316
  %318 = vdwg.mxu0
  %319 = vst [vmem:[#allocation2] sm:$0xff] %v160
  %320 = vst [vmem:[#allocation2 + $0x8] sm:$0xff] %v162
  %321 = vst [vmem:[#allocation2 + $0x10] sm:$0xff] %v273
  %322 = vst [vmem:[#allocation2 + $0x18] sm:$0xff] %v275
  %323 = vst [vmem:[#allocation2 + $0x20] sm:$0xff] %v166
  %324 = vst [vmem:[#allocation2 + $0x28] sm:$0xff] %v168
  %325 = vst [vmem:[#allocation2 + $0x30] sm:$0xff] %v279
  %326 = vst [vmem:[#allocation2 + $0x38] sm:$0xff] %v281
  %327 = vst [vmem:[#allocation2 + $0x40] sm:$0xff] %v172
  %328 = vst [vmem:[#allocation2 + $0x48] sm:$0xff] %v174
  %329 = vst [vmem:[#allocation2 + $0x50] sm:$0xff] %v285
  %330 = vst [vmem:[#allocation2 + $0x58] sm:$0xff] %v287
  %331 = vst [vmem:[#allocation2 + $0x60] sm:$0xff] %v178
  %332 = vst [vmem:[#allocation2 + $0x68] sm:$0xff] %v180
  %333 = vst [vmem:[#allocation2 + $0x70] sm:$0xff] %v291
  %334 = vst [vmem:[#allocation2 + $0x78] sm:$0xff] %v293
  %335 = vst [vmem:[#allocation2 + $0x80] sm:$0xff] %v184
  %336 = vst [vmem:[#allocation2 + $0x88] sm:$0xff] %v186
  %337 = vst [vmem:[#allocation2 + $0x90] sm:$0xff] %v297
  %338 = vst [vmem:[#allocation2 + $0x98] sm:$0xff] %v299
  %339 = vst [vmem:[#allocation2 + $0xa0] sm:$0xff] %v190
  %340 = vst [vmem:[#allocation2 + $0xa8] sm:$0xff] %v192
  %341 = vst [vmem:[#allocation2 + $0xb0] sm:$0xff] %v303
  %342 = vst [vmem:[#allocation2 + $0xb8] sm:$0xff] %v305
  %343 = vst [vmem:[#allocation2 + $0xc0] sm:$0xff] %v196
  %344 = vst [vmem:[#allocation2 + $0xc8] sm:$0xff] %v198
  %345 = vst [vmem:[#allocation2 + $0xd0] sm:$0xff] %v309
  %346 = vst [vmem:[#allocation2 + $0xd8] sm:$0xff] %v311
  %347 = vst [vmem:[#allocation2 + $0xe0] sm:$0xff] %v202
  %348 = vst [vmem:[#allocation2 + $0xe8] sm:$0xff] %v204
  %349 = vst [vmem:[#allocation2 + $0xf0] sm:$0xff] %v315
  %350 = vst [vmem:[#allocation2 + $0xf8] sm:$0xff] %v317
  %s351 = smul.u32 0, 4
  %s352 = smul.addr %s351, 8
  %s353 = scalar_lea.vmem [#allocation2], %s352
  %v354 = vld [vmem:[%s353] sm:$0xff]
  %v355 = vld [vmem:[%s353 + $0x8] sm:$0xff]
  %v356 = vld [vmem:[%s353 + $0x10] sm:$0xff]
  %v357 = vld [vmem:[%s353 + $0x18] sm:$0xff]
  %v358 = vld [vmem:[%s2] sm:$0xff]
  %v359 = vld [vmem:[%s2 + $0x8] sm:$0xff]
  %v360 = vld [vmem:[%s2 + $0x10] sm:$0xff]
  %v361 = vld [vmem:[%s2 + $0x18] sm:$0xff]
  %v362 = vld [vmem:[%s2 + $0x20] sm:$0xff]
  %v363 = vld [vmem:[%s2 + $0x28] sm:$0xff]
  %v364 = vld [vmem:[%s2 + $0x30] sm:$0xff]
  %v365 = vld [vmem:[%s2 + $0x38] sm:$0xff]
  %v366 = vld [vmem:[%s2 + $0x40] sm:$0xff]
  %v367 = vld [vmem:[%s2 + $0x48] sm:$0xff]
  %v368 = vld [vmem:[%s2 + $0x50] sm:$0xff]
  %v369 = vld [vmem:[%s2 + $0x58] sm:$0xff]
  %v370 = vld [vmem:[%s2 + $0x60] sm:$0xff]
  %v371 = vld [vmem:[%s2 + $0x68] sm:$0xff]
  %v372 = vld [vmem:[%s2 + $0x70] sm:$0xff]
  %v373 = vld [vmem:[%s2 + $0x78] sm:$0xff]
  %v374 = vld [vmem:[%s2 + $0x80] sm:$0xff]
  %v375 = vld [vmem:[%s2 + $0x88] sm:$0xff]
  %v376 = vld [vmem:[%s2 + $0x90] sm:$0xff]
  %v377 = vld [vmem:[%s2 + $0x98] sm:$0xff]
  %v378 = vld [vmem:[%s2 + $0xa0] sm:$0xff]
  %v379 = vld [vmem:[%s2 + $0xa8] sm:$0xff]
  %v380 = vld [vmem:[%s2 + $0xb0] sm:$0xff]
  %v381 = vld [vmem:[%s2 + $0xb8] sm:$0xff]
  %v382 = vld [vmem:[%s2 + $0xc0] sm:$0xff]
  %v383 = vld [vmem:[%s2 + $0xc8] sm:$0xff]
  %v384 = vld [vmem:[%s2 + $0xd0] sm:$0xff]
  %v385 = vld [vmem:[%s2 + $0xd8] sm:$0xff]
  %v386 = vld [vmem:[%s2 + $0xe0] sm:$0xff]
  %v387 = vld [vmem:[%s2 + $0xe8] sm:$0xff]
  %v388 = vld [vmem:[%s2 + $0xf0] sm:$0xff]
  %v389 = vld [vmem:[%s2 + $0xf8] sm:$0xff]
  %v390 = vld [vmem:[%s2 + $0x100] sm:$0xff]
  %v391 = vld [vmem:[%s2 + $0x108] sm:$0xff]
  %v392 = vld [vmem:[%s2 + $0x110] sm:$0xff]
  %v393 = vld [vmem:[%s2 + $0x118] sm:$0xff]
  %v394 = vld [vmem:[%s2 + $0x120] sm:$0xff]
  %v395 = vld [vmem:[%s2 + $0x128] sm:$0xff]
  %v396 = vld [vmem:[%s2 + $0x130] sm:$0xff]
  %v397 = vld [vmem:[%s2 + $0x138] sm:$0xff]
  %v398 = vld [vmem:[%s2 + $0x140] sm:$0xff]
  %v399 = vld [vmem:[%s2 + $0x148] sm:$0xff]
  %v400 = vld [vmem:[%s2 + $0x150] sm:$0xff]
  %v401 = vld [vmem:[%s2 + $0x158] sm:$0xff]
  %v402 = vld [vmem:[%s2 + $0x160] sm:$0xff]
  %v403 = vld [vmem:[%s2 + $0x168] sm:$0xff]
  %v404 = vld [vmem:[%s2 + $0x170] sm:$0xff]
  %v405 = vld [vmem:[%s2 + $0x178] sm:$0xff]
  %v406 = vld [vmem:[%s2 + $0x180] sm:$0xff]
  %v407 = vld [vmem:[%s2 + $0x188] sm:$0xff]
  %v408 = vld [vmem:[%s2 + $0x190] sm:$0xff]
  %v409 = vld [vmem:[%s2 + $0x198] sm:$0xff]
  %v410 = vld [vmem:[%s2 + $0x1a0] sm:$0xff]
  %v411 = vld [vmem:[%s2 + $0x1a8] sm:$0xff]
  %v412 = vld [vmem:[%s2 + $0x1b0] sm:$0xff]
  %v413 = vld [vmem:[%s2 + $0x1b8] sm:$0xff]
  %v414 = vld [vmem:[%s2 + $0x1c0] sm:$0xff]
  %v415 = vld [vmem:[%s2 + $0x1c8] sm:$0xff]
  %v416 = vld [vmem:[%s2 + $0x1d0] sm:$0xff]
  %v417 = vld [vmem:[%s2 + $0x1d8] sm:$0xff]
  %v418 = vld [vmem:[%s2 + $0x1e0] sm:$0xff]
  %v419 = vld [vmem:[%s2 + $0x1e8] sm:$0xff]
  %v420 = vld [vmem:[%s2 + $0x1f0] sm:$0xff]
  %v421 = vld [vmem:[%s2 + $0x1f8] sm:$0xff]
  %422 = vmatprep.subr.mxu0 %v359
  %423 = vmatpush1.msra.mxu0 %v358
  %424 = vmatprep.subr.mxu0 %v363
  %425 = vmatpush1.msra.mxu0 %v362
  %426 = vmatprep.subr.mxu0 %v367
  %427 = vmatpush1.msra.mxu0 %v366
  %428 = vmatprep.subr.mxu0 %v371
  %429 = vmatpush1.msra.mxu0 %v370
  %430 = vmatprep.subr.mxu0 %v375
  %431 = vmatpush1.msra.mxu0 %v374
  %432 = vmatprep.subr.mxu0 %v379
  %433 = vmatpush1.msra.mxu0 %v378
  %434 = vmatprep.subr.mxu0 %v383
  %435 = vmatpush1.msra.mxu0 %v382
  %436 = vmatprep.subr.mxu0 %v387
  %437 = vmatpush1.msra.mxu0 %v386
  %438 = vmatprep.subr.mxu0 %v391
  %439 = vmatpush1.msra.mxu0 %v390
  %440 = vmatprep.subr.mxu0 %v395
  %441 = vmatpush1.msra.mxu0 %v394
  %442 = vmatprep.subr.mxu0 %v399
  %443 = vmatpush1.msra.mxu0 %v398
  %444 = vmatprep.subr.mxu0 %v403
  %445 = vmatpush1.msra.mxu0 %v402
  %446 = vmatprep.subr.mxu0 %v407
  %447 = vmatpush1.msra.mxu0 %v406
  %448 = vmatprep.subr.mxu0 %v411
  %449 = vmatpush1.msra.mxu0 %v410
  %450 = vmatprep.subr.mxu0 %v415
  %451 = vmatpush1.msra.mxu0 %v414
  %452 = vmatprep.subr.mxu0 %v419
  %453 = vmatpush1.msra.mxu0 %v418
  %454 = vmatprep.subr.mxu0 0.0
  %455 = vmatpush1.msra.mxu0 0.0
  %456 = vmatprep.subr.mxu0 0.0
  %457 = vmatpush1.msra.mxu0 0.0
  %458 = vmatprep.subr.mxu0 0.0
  %459 = vmatpush1.msra.mxu0 0.0
  %460 = vmatprep.subr.mxu0 0.0
  %461 = vmatpush1.msra.mxu0 0.0
  %462 = vmatprep.subr.mxu0 0.0
  %463 = vmatpush1.msra.mxu0 0.0
  %464 = vmatprep.subr.mxu0 0.0
  %465 = vmatpush1.msra.mxu0 0.0
  %466 = vmatprep.subr.mxu0 0.0
  %467 = vmatpush1.msra.mxu0 0.0
  %468 = vmatprep.subr.mxu0 0.0
  %469 = vmatpush1.msra.mxu0 0.0
  %470 = vmatprep.subr.mxu0 0.0
  %471 = vmatpush1.msra.mxu0 0.0
  %472 = vmatprep.subr.mxu0 0.0
  %473 = vmatpush1.msra.mxu0 0.0
  %474 = vmatprep.subr.mxu0 0.0
  %475 = vmatpush1.msra.mxu0 0.0
  %476 = vmatprep.subr.mxu0 0.0
  %477 = vmatpush1.msra.mxu0 0.0
  %478 = vmatprep.subr.mxu0 0.0
  %479 = vmatpush1.msra.mxu0 0.0
  %480 = vmatprep.subr.mxu0 0.0
  %481 = vmatpush1.msra.mxu0 0.0
  %482 = vmatprep.subr.mxu0 0.0
  %483 = vmatpush1.msra.mxu0 0.0
  %484 = vmatprep.subr.mxu0 0.0
  %485 = vmatpush1.msra.mxu0 0.0
  %486 = vmatprep.mubr.f32.mxu0 0.0
  %487 = vmatmul.mubr.f32.gmra.mrb[0].mxu0 0.0
  %v488 = vpop.f32.mrb[0].mxu0
  %v489 = vadd.f32 0.0, %v488
  %v490 = vpop.f32.mrb[0].mxu0
  %v491 = vadd.f32 0.0, %v490
  %492 = vdwg.mxu0
  %493 = vmatprep.subr.mxu0 %v361
  %494 = vmatpush1.msra.mxu0 %v360
  %495 = vmatprep.subr.mxu0 %v365
  %496 = vmatpush1.msra.mxu0 %v364
  %497 = vmatprep.subr.mxu0 %v369
  %498 = vmatpush1.msra.mxu0 %v368
  %499 = vmatprep.subr.mxu0 %v373
  %500 = vmatpush1.msra.mxu0 %v372
  %501 = vmatprep.subr.mxu0 %v377
  %502 = vmatpush1.msra.mxu0 %v376
  %503 = vmatprep.subr.mxu0 %v381
  %504 = vmatpush1.msra.mxu0 %v380
  %505 = vmatprep.subr.mxu0 %v385
  %506 = vmatpush1.msra.mxu0 %v384
  %507 = vmatprep.subr.mxu0 %v389
  %508 = vmatpush1.msra.mxu0 %v388
  %509 = vmatprep.subr.mxu0 %v393
  %510 = vmatpush1.msra.mxu0 %v392
  %511 = vmatprep.subr.mxu0 %v397
  %512 = vmatpush1.msra.mxu0 %v396
  %513 = vmatprep.subr.mxu0 %v401
  %514 = vmatpush1.msra.mxu0 %v400
  %515 = vmatprep.subr.mxu0 %v405
  %516 = vmatpush1.msra.mxu0 %v404
  %517 = vmatprep.subr.mxu0 %v409
  %518 = vmatpush1.msra.mxu0 %v408
  %519 = vmatprep.subr.mxu0 %v413
  %520 = vmatpush1.msra.mxu0 %v412
  %521 = vmatprep.subr.mxu0 %v417
  %522 = vmatpush1.msra.mxu0 %v416
  %523 = vmatprep.subr.mxu0 %v421
  %524 = vmatpush1.msra.mxu0 %v420
  %525 = vmatprep.subr.mxu0 0.0
  %526 = vmatpush1.msra.mxu0 0.0
  %527 = vmatprep.subr.mxu0 0.0
  %528 = vmatpush1.msra.mxu0 0.0
  %529 = vmatprep.subr.mxu0 0.0
  %530 = vmatpush1.msra.mxu0 0.0
  %531 = vmatprep.subr.mxu0 0.0
  %532 = vmatpush1.msra.mxu0 0.0
  %533 = vmatprep.subr.mxu0 0.0
  %534 = vmatpush1.msra.mxu0 0.0
  %535 = vmatprep.subr.mxu0 0.0
  %536 = vmatpush1.msra.mxu0 0.0
  %537 = vmatprep.subr.mxu0 0.0
  %538 = vmatpush1.msra.mxu0 0.0
  %539 = vmatprep.subr.mxu0 0.0
  %540 = vmatpush1.msra.mxu0 0.0
  %541 = vmatprep.subr.mxu0 0.0
  %542 = vmatpush1.msra.mxu0 0.0
  %543 = vmatprep.subr.mxu0 0.0
  %544 = vmatpush1.msra.mxu0 0.0
  %545 = vmatprep.subr.mxu0 0.0
  %546 = vmatpush1.msra.mxu0 0.0
  %547 = vmatprep.subr.mxu0 0.0
  %548 = vmatpush1.msra.mxu0 0.0
  %549 = vmatprep.subr.mxu0 0.0
  %550 = vmatpush1.msra.mxu0 0.0
  %551 = vmatprep.subr.mxu0 0.0
  %552 = vmatpush1.msra.mxu0 0.0
  %553 = vmatprep.subr.mxu0 0.0
  %554 = vmatpush1.msra.mxu0 0.0
  %555 = vmatprep.subr.mxu0 0.0
  %556 = vmatpush1.msra.mxu0 0.0
  %557 = vmatprep.mubr.f32.mxu0 0.0
  %558 = vmatmul.mubr.f32.gmra.mrb[0].mxu0 0.0
  %v559 = vpop.f32.mrb[0].mxu0
  %v560 = vadd.f32 0.0, %v559
  %v561 = vpop.f32.mrb[0].mxu0
  %v562 = vadd.f32 0.0, %v561
  %563 = vdwg.mxu0
  %v564 = vadd.f32 %v354, %v489
  %v565 = vadd.f32 %v355, %v491
  %v566 = vadd.f32 %v356, %v560
  %v567 = vadd.f32 %v357, %v562
  %v568 = vxor.u32 %v564, 2147483648
  %v569 = vxor.u32 %v565, 2147483648
  %v570 = vxor.u32 %v566, 2147483648
  %v571 = vmul.f32 %v568, 1.442695
  %v572 = vpow.pop %v571
  %v573 = vmul.f32 %v569, 1.442695
  %v574 = vpow.pop %v573
  %v575 = vmul.f32 %v570, 1.442695
  %v576 = vpow.pop %v575
  %v577 = vadd.f32 %v572, 1.0
  %v578 = vadd.f32 %v574, 1.0
  %v579 = vadd.f32 %v576, 1.0
  %v580 = vrcp.pop %v577
  %v581 = vmul.f32 1.0, %v580
  %v582 = vrcp.pop %v578
  %v583 = vmul.f32 1.0, %v582
  %v584 = vrcp.pop %v579
  %v585 = vmul.f32 1.0, %v584
  %v586 = vtanh.pop %v567
  %v587 = vmul.f32 %v583, 0.0
  %v588 = vmul.f32 %v581, %v586
  %v589 = vadd.f32 %v587, %v588
  %v590 = vtanh.pop %v589
  %v591 = vmul.f32 %v585, %v590
  %s592 = smul.u32 1, 4
  %s593 = smul.addr %s592, 8
  %s594 = scalar_lea.vmem [#allocation2], %s593
  %v595 = vld [vmem:[%s594] sm:$0xff]
  %v596 = vld [vmem:[%s594 + $0x8] sm:$0xff]
  %v597 = vld [vmem:[%s594 + $0x10] sm:$0xff]
  %v598 = vld [vmem:[%s594 + $0x18] sm:$0xff]
  %599 = vmatprep.subr.mxu0 %v359
  %600 = vmatpush1.msra.mxu0 %v358
  %601 = vmatprep.subr.mxu0 %v363
  %602 = vmatpush1.msra.mxu0 %v362
  %603 = vmatprep.subr.mxu0 %v367
  %604 = vmatpush1.msra.mxu0 %v366
  %605 = vmatprep.subr.mxu0 %v371
  %606 = vmatpush1.msra.mxu0 %v370
  %607 = vmatprep.subr.mxu0 %v375
  %608 = vmatpush1.msra.mxu0 %v374
  %609 = vmatprep.subr.mxu0 %v379
  %610 = vmatpush1.msra.mxu0 %v378
  %611 = vmatprep.subr.mxu0 %v383
  %612 = vmatpush1.msra.mxu0 %v382
  %613 = vmatprep.subr.mxu0 %v387
  %614 = vmatpush1.msra.mxu0 %v386
  %615 = vmatprep.subr.mxu0 %v391
  %616 = vmatpush1.msra.mxu0 %v390
  %617 = vmatprep.subr.mxu0 %v395
  %618 = vmatpush1.msra.mxu0 %v394
  %619 = vmatprep.subr.mxu0 %v399
  %620 = vmatpush1.msra.mxu0 %v398
  %621 = vmatprep.subr.mxu0 %v403
  %622 = vmatpush1.msra.mxu0 %v402
  %623 = vmatprep.subr.mxu0 %v407
  %624 = vmatpush1.msra.mxu0 %v406
  %625 = vmatprep.subr.mxu0 %v411
  %626 = vmatpush1.msra.mxu0 %v410
  %627 = vmatprep.subr.mxu0 %v415
  %628 = vmatpush1.msra.mxu0 %v414
  %629 = vmatprep.subr.mxu0 %v419
  %630 = vmatpush1.msra.mxu0 %v418
  %631 = vmatprep.subr.mxu0 0.0
  %632 = vmatpush1.msra.mxu0 0.0
  %633 = vmatprep.subr.mxu0 0.0
  %634 = vmatpush1.msra.mxu0 0.0
  %635 = vmatprep.subr.mxu0 0.0
  %636 = vmatpush1.msra.mxu0 0.0
  %637 = vmatprep.subr.mxu0 0.0
  %638 = vmatpush1.msra.mxu0 0.0
  %639 = vmatprep.subr.mxu0 0.0
  %640 = vmatpush1.msra.mxu0 0.0
  %641 = vmatprep.subr.mxu0 0.0
  %642 = vmatpush1.msra.mxu0 0.0
  %643 = vmatprep.subr.mxu0 0.0
  %644 = vmatpush1.msra.mxu0 0.0
  %645 = vmatprep.subr.mxu0 0.0
  %646 = vmatpush1.msra.mxu0 0.0
  %647 = vmatprep.subr.mxu0 0.0
  %648 = vmatpush1.msra.mxu0 0.0
  %649 = vmatprep.subr.mxu0 0.0
  %650 = vmatpush1.msra.mxu0 0.0
  %651 = vmatprep.subr.mxu0 0.0
  %652 = vmatpush1.msra.mxu0 0.0
  %653 = vmatprep.subr.mxu0 0.0
  %654 = vmatpush1.msra.mxu0 0.0
  %655 = vmatprep.subr.mxu0 0.0
  %656 = vmatpush1.msra.mxu0 0.0
  %657 = vmatprep.subr.mxu0 0.0
  %658 = vmatpush1.msra.mxu0 0.0
  %659 = vmatprep.subr.mxu0 0.0
  %660 = vmatpush1.msra.mxu0 0.0
  %661 = vmatprep.subr.mxu0 0.0
  %662 = vmatpush1.msra.mxu0 0.0
  %663 = vmatprep.mubr.f32.mxu0 0.0
  %664 = vmatmul.mubr.f32.gmra.mrb[0].mxu0 %v591
  %v665 = vpop.f32.mrb[0].mxu0
  %v666 = vadd.f32 0.0, %v665
  %v667 = vpop.f32.mrb[0].mxu0
  %v668 = vadd.f32 0.0, %v667
  %669 = vdwg.mxu0
  %670 = vmatprep.subr.mxu0 %v361
  %671 = vmatpush1.msra.mxu0 %v360
  %672 = vmatprep.subr.mxu0 %v365
  %673 = vmatpush1.msra.mxu0 %v364
  %674 = vmatprep.subr.mxu0 %v369
  %675 = vmatpush1.msra.mxu0 %v368
  %676 = vmatprep.subr.mxu0 %v373
  %677 = vmatpush1.msra.mxu0 %v372
  %678 = vmatprep.subr.mxu0 %v377
  %679 = vmatpush1.msra.mxu0 %v376
  %680 = vmatprep.subr.mxu0 %v381
  %681 = vmatpush1.msra.mxu0 %v380
  %682 = vmatprep.subr.mxu0 %v385
  %683 = vmatpush1.msra.mxu0 %v384
  %684 = vmatprep.subr.mxu0 %v389
  %685 = vmatpush1.msra.mxu0 %v388
  %686 = vmatprep.subr.mxu0 %v393
  %687 = vmatpush1.msra.mxu0 %v392
  %688 = vmatprep.subr.mxu0 %v397
  %689 = vmatpush1.msra.mxu0 %v396
  %690 = vmatprep.subr.mxu0 %v401
  %691 = vmatpush1.msra.mxu0 %v400
  %692 = vmatprep.subr.mxu0 %v405
  %693 = vmatpush1.msra.mxu0 %v404
  %694 = vmatprep.subr.mxu0 %v409
  %695 = vmatpush1.msra.mxu0 %v408
  %696 = vmatprep.subr.mxu0 %v413
  %697 = vmatpush1.msra.mxu0 %v412
  %698 = vmatprep.subr.mxu0 %v417
  %699 = vmatpush1.msra.mxu0 %v416
  %700 = vmatprep.subr.mxu0 %v421
  %701 = vmatpush1.msra.mxu0 %v420
  %702 = vmatprep.subr.mxu0 0.0
  %703 = vmatpush1.msra.mxu0 0.0
  %704 = vmatprep.subr.mxu0 0.0
  %705 = vmatpush1.msra.mxu0 0.0
  %706 = vmatprep.subr.mxu0 0.0
  %707 = vmatpush1.msra.mxu0 0.0
  %708 = vmatprep.subr.mxu0 0.0
  %709 = vmatpush1.msra.mxu0 0.0
  %710 = vmatprep.subr.mxu0 0.0
  %711 = vmatpush1.msra.mxu0 0.0
  %712 = vmatprep.subr.mxu0 0.0
  %713 = vmatpush1.msra.mxu0 0.0
  %714 = vmatprep.subr.mxu0 0.0
  %715 = vmatpush1.msra.mxu0 0.0
  %716 = vmatprep.subr.mxu0 0.0
  %717 = vmatpush1.msra.mxu0 0.0
  %718 = vmatprep.subr.mxu0 0.0
  %719 = vmatpush1.msra.mxu0 0.0
  %720 = vmatprep.subr.mxu0 0.0
  %721 = vmatpush1.msra.mxu0 0.0
  %722 = vmatprep.subr.mxu0 0.0
  %723 = vmatpush1.msra.mxu0 0.0
  %724 = vmatprep.subr.mxu0 0.0
  %725 = vmatpush1.msra.mxu0 0.0
  %726 = vmatprep.subr.mxu0 0.0
  %727 = vmatpush1.msra.mxu0 0.0
  %728 = vmatprep.subr.mxu0 0.0
  %729 = vmatpush1.msra.mxu0 0.0
  %730 = vmatprep.subr.mxu0 0.0
  %731 = vmatpush1.msra.mxu0 0.0
  %732 = vmatprep.subr.mxu0 0.0
  %733 = vmatpush1.msra.mxu0 0.0
  %734 = vmatprep.mubr.f32.mxu0 0.0
  %735 = vmatmul.mubr.f32.gmra.mrb[0].mxu0 %v591
  %v736 = vpop.f32.mrb[0].mxu0
  %v737 = vadd.f32 0.0, %v736
  %v738 = vpop.f32.mrb[0].mxu0
  %v739 = vadd.f32 0.0, %v738
  %740 = vdwg.mxu0
  %v741 = vadd.f32 %v595, %v666
  %v742 = vadd.f32 %v596, %v668
  %v743 = vadd.f32 %v597, %v737
  %v744 = vadd.f32 %v598, %v739
  %v745 = vxor.u32 %v741, 2147483648
  %v746 = vxor.u32 %v742, 2147483648
  %v747 = vxor.u32 %v743, 2147483648
  %v748 = vmul.f32 %v745, 1.442695
  %v749 = vpow.pop %v748
  %v750 = vmul.f32 %v746, 1.442695
  %v751 = vpow.pop %v750
  %v752 = vmul.f32 %v747, 1.442695
  %v753 = vpow.pop %v752
  %v754 = vadd.f32 %v749, 1.0
  %v755 = vadd.f32 %v751, 1.0
  %v756 = vadd.f32 %v753, 1.0
  %v757 = vrcp.pop %v754
  %v758 = vmul.f32 1.0, %v757
  %v759 = vrcp.pop %v755
  %v760 = vmul.f32 1.0, %v759
  %v761 = vrcp.pop %v756
  %v762 = vmul.f32 1.0, %v761
  %v763 = vtanh.pop %v744
  %v764 = vmul.f32 %v760, %v589
  %v765 = vmul.f32 %v758, %v763
  %v766 = vadd.f32 %v764, %v765
  %v767 = vtanh.pop %v766
  %v768 = vmul.f32 %v762, %v767
  %s769 = smul.u32 2, 4
  %s770 = smul.addr %s769, 8
  %s771 = scalar_lea.vmem [#allocation2], %s770
  %v772 = vld [vmem:[%s771] sm:$0xff]
  %v773 = vld [vmem:[%s771 + $0x8] sm:$0xff]
  %v774 = vld [vmem:[%s771 + $0x10] sm:$0xff]
  %v775 = vld [vmem:[%s771 + $0x18] sm:$0xff]
  %776 = vmatprep.subr.mxu0 %v359
  %777 = vmatpush1.msra.mxu0 %v358
  %778 = vmatprep.subr.mxu0 %v363
  %779 = vmatpush1.msra.mxu0 %v362
  %780 = vmatprep.subr.mxu0 %v367
  %781 = vmatpush1.msra.mxu0 %v366
  %782 = vmatprep.subr.mxu0 %v371
  %783 = vmatpush1.msra.mxu0 %v370
  %784 = vmatprep.subr.mxu0 %v375
  %785 = vmatpush1.msra.mxu0 %v374
  %786 = vmatprep.subr.mxu0 %v379
  %787 = vmatpush1.msra.mxu0 %v378
  %788 = vmatprep.subr.mxu0 %v383
  %789 = vmatpush1.msra.mxu0 %v382
  %790 = vmatprep.subr.mxu0 %v387
  %791 = vmatpush1.msra.mxu0 %v386
  %792 = vmatprep.subr.mxu0 %v391
  %793 = vmatpush1.msra.mxu0 %v390
  %794 = vmatprep.subr.mxu0 %v395
  %795 = vmatpush1.msra.mxu0 %v394
  %796 = vmatprep.subr.mxu0 %v399
  %797 = vmatpush1.msra.mxu0 %v398
  %798 = vmatprep.subr.mxu0 %v403
  %799 = vmatpush1.msra.mxu0 %v402
  %800 = vmatprep.subr.mxu0 %v407
  %801 = vmatpush1.msra.mxu0 %v406
  %802 = vmatprep.subr.mxu0 %v411
  %803 = vmatpush1.msra.mxu0 %v410
  %804 = vmatprep.subr.mxu0 %v415
  %805 = vmatpush1.msra.mxu0 %v414
  %806 = vmatprep.subr.mxu0 %v419
  %807 = vmatpush1.msra.mxu0 %v418
  %808 = vmatprep.subr.mxu0 0.0
  %809 = vmatpush1.msra.mxu0 0.0
  %810 = vmatprep.subr.mxu0 0.0
  %811 = vmatpush1.msra.mxu0 0.0
  %812 = vmatprep.subr.mxu0 0.0
  %813 = vmatpush1.msra.mxu0 0.0
  %814 = vmatprep.subr.mxu0 0.0
  %815 = vmatpush1.msra.mxu0 0.0
  %816 = vmatprep.subr.mxu0 0.0
  %817 = vmatpush1.msra.mxu0 0.0
  %818 = vmatprep.subr.mxu0 0.0
  %819 = vmatpush1.msra.mxu0 0.0
  %820 = vmatprep.subr.mxu0 0.0
  %821 = vmatpush1.msra.mxu0 0.0
  %822 = vmatprep.subr.mxu0 0.0
  %823 = vmatpush1.msra.mxu0 0.0
  %824 = vmatprep.subr.mxu0 0.0
  %825 = vmatpush1.msra.mxu0 0.0
  %826 = vmatprep.subr.mxu0 0.0
  %827 = vmatpush1.msra.mxu0 0.0
  %828 = vmatprep.subr.mxu0 0.0
  %829 = vmatpush1.msra.mxu0 0.0
  %830 = vmatprep.subr.mxu0 0.0
  %831 = vmatpush1.msra.mxu0 0.0
  %832 = vmatprep.subr.mxu0 0.0
  %833 = vmatpush1.msra.mxu0 0.0
  %834 = vmatprep.subr.mxu0 0.0
  %835 = vmatpush1.msra.mxu0 0.0
  %836 = vmatprep.subr.mxu0 0.0
  %837 = vmatpush1.msra.mxu0 0.0
  %838 = vmatprep.subr.mxu0 0.0
  %839 = vmatpush1.msra.mxu0 0.0
  %840 = vmatprep.mubr.f32.mxu0 0.0
  %841 = vmatmul.mubr.f32.gmra.mrb[0].mxu0 %v768
  %v842 = vpop.f32.mrb[0].mxu0
  %v843 = vadd.f32 0.0, %v842
  %v844 = vpop.f32.mrb[0].mxu0
  %v845 = vadd.f32 0.0, %v844
  %846 = vdwg.mxu0
  %847 = vmatprep.subr.mxu0 %v361
  %848 = vmatpush1.msra.mxu0 %v360
  %849 = vmatprep.subr.mxu0 %v365
  %850 = vmatpush1.msra.mxu0 %v364
  %851 = vmatprep.subr.mxu0 %v369
  %852 = vmatpush1.msra.mxu0 %v368
  %853 = vmatprep.subr.mxu0 %v373
  %854 = vmatpush1.msra.mxu0 %v372
  %855 = vmatprep.subr.mxu0 %v377
  %856 = vmatpush1.msra.mxu0 %v376
  %857 = vmatprep.subr.mxu0 %v381
  %858 = vmatpush1.msra.mxu0 %v380
  %859 = vmatprep.subr.mxu0 %v385
  %860 = vmatpush1.msra.mxu0 %v384
  %861 = vmatprep.subr.mxu0 %v389
  %862 = vmatpush1.msra.mxu0 %v388
  %863 = vmatprep.subr.mxu0 %v393
  %864 = vmatpush1.msra.mxu0 %v392
  %865 = vmatprep.subr.mxu0 %v397
  %866 = vmatpush1.msra.mxu0 %v396
  %867 = vmatprep.subr.mxu0 %v401
  %868 = vmatpush1.msra.mxu0 %v400
  %869 = vmatprep.subr.mxu0 %v405
  %870 = vmatpush1.msra.mxu0 %v404
  %871 = vmatprep.subr.mxu0 %v409
  %872 = vmatpush1.msra.mxu0 %v408
  %873 = vmatprep.subr.mxu0 %v413
  %874 = vmatpush1.msra.mxu0 %v412
  %875 = vmatprep.subr.mxu0 %v417
  %876 = vmatpush1.msra.mxu0 %v416
  %877 = vmatprep.subr.mxu0 %v421
  %878 = vmatpush1.msra.mxu0 %v420
  %879 = vmatprep.subr.mxu0 0.0
  %880 = vmatpush1.msra.mxu0 0.0
  %881 = vmatprep.subr.mxu0 0.0
  %882 = vmatpush1.msra.mxu0 0.0
  %883 = vmatprep.subr.mxu0 0.0
  %884 = vmatpush1.msra.mxu0 0.0
  %885 = vmatprep.subr.mxu0 0.0
  %886 = vmatpush1.msra.mxu0 0.0
  %887 = vmatprep.subr.mxu0 0.0
  %888 = vmatpush1.msra.mxu0 0.0
  %889 = vmatprep.subr.mxu0 0.0
  %890 = vmatpush1.msra.mxu0 0.0
  %891 = vmatprep.subr.mxu0 0.0
  %892 = vmatpush1.msra.mxu0 0.0
  %893 = vmatprep.subr.mxu0 0.0
  %894 = vmatpush1.msra.mxu0 0.0
  %895 = vmatprep.subr.mxu0 0.0
  %896 = vmatpush1.msra.mxu0 0.0
  %897 = vmatprep.subr.mxu0 0.0
  %898 = vmatpush1.msra.mxu0 0.0
  %899 = vmatprep.subr.mxu0 0.0
  %900 = vmatpush1.msra.mxu0 0.0
  %901 = vmatprep.subr.mxu0 0.0
  %902 = vmatpush1.msra.mxu0 0.0
  %903 = vmatprep.subr.mxu0 0.0
  %904 = vmatpush1.msra.mxu0 0.0
  %905 = vmatprep.subr.mxu0 0.0
  %906 = vmatpush1.msra.mxu0 0.0
  %907 = vmatprep.subr.mxu0 0.0
  %908 = vmatpush1.msra.mxu0 0.0
  %909 = vmatprep.subr.mxu0 0.0
  %910 = vmatpush1.msra.mxu0 0.0
  %911 = vmatprep.mubr.f32.mxu0 0.0
  %912 = vmatmul.mubr.f32.gmra.mrb[0].mxu0 %v768
  %v913 = vpop.f32.mrb[0].mxu0
  %v914 = vadd.f32 0.0, %v913
  %v915 = vpop.f32.mrb[0].mxu0
  %v916 = vadd.f32 0.0, %v915
  %917 = vdwg.mxu0
  %v918 = vadd.f32 %v772, %v843
  %v919 = vadd.f32 %v773, %v845
  %v920 = vadd.f32 %v774, %v914
  %v921 = vadd.f32 %v775, %v916
  %v922 = vxor.u32 %v918, 2147483648
  %v923 = vxor.u32 %v919, 2147483648
  %v924 = vxor.u32 %v920, 2147483648
  %v925 = vmul.f32 %v922, 1.442695
  %v926 = vpow.pop %v925
  %v927 = vmul.f32 %v923, 1.442695
  %v928 = vpow.pop %v927
  %v929 = vmul.f32 %v924, 1.442695
  %v930 = vpow.pop %v929
  %v931 = vadd.f32 %v926, 1.0
  %v932 = vadd.f32 %v928, 1.0
  %v933 = vadd.f32 %v930, 1.0
  %v934 = vrcp.pop %v931
  %v935 = vmul.f32 1.0, %v934
  %v936 = vrcp.pop %v932
  %v937 = vmul.f32 1.0, %v936
  %v938 = vrcp.pop %v933
  %v939 = vmul.f32 1.0, %v938
  %v940 = vtanh.pop %v921
  %v941 = vmul.f32 %v937, %v766
  %v942 = vmul.f32 %v935, %v940
  %v943 = vadd.f32 %v941, %v942
  %v944 = vtanh.pop %v943
  %v945 = vmul.f32 %v939, %v944
  %s946 = smul.u32 3, 4
  %s947 = smul.addr %s946, 8
  %s948 = scalar_lea.vmem [#allocation2], %s947
  %v949 = vld [vmem:[%s948] sm:$0xff]
  %v950 = vld [vmem:[%s948 + $0x8] sm:$0xff]
  %v951 = vld [vmem:[%s948 + $0x10] sm:$0xff]
  %v952 = vld [vmem:[%s948 + $0x18] sm:$0xff]
  %953 = vmatprep.subr.mxu0 %v359
  %954 = vmatpush1.msra.mxu0 %v358
  %955 = vmatprep.subr.mxu0 %v363
  %956 = vmatpush1.msra.mxu0 %v362
  %957 = vmatprep.subr.mxu0 %v367
  %958 = vmatpush1.msra.mxu0 %v366
  %959 = vmatprep.subr.mxu0 %v371
  %960 = vmatpush1.msra.mxu0 %v370
  %961 = vmatprep.subr.mxu0 %v375
  %962 = vmatpush1.msra.mxu0 %v374
  %963 = vmatprep.subr.mxu0 %v379
  %964 = vmatpush1.msra.mxu0 %v378
  %965 = vmatprep.subr.mxu0 %v383
  %966 = vmatpush1.msra.mxu0 %v382
  %967 = vmatprep.subr.mxu0 %v387
  %968 = vmatpush1.msra.mxu0 %v386
  %969 = vmatprep.subr.mxu0 %v391
  %970 = vmatpush1.msra.mxu0 %v390
  %971 = vmatprep.subr.mxu0 %v395
  %972 = vmatpush1.msra.mxu0 %v394
  %973 = vmatprep.subr.mxu0 %v399
  %974 = vmatpush1.msra.mxu0 %v398
  %975 = vmatprep.subr.mxu0 %v403
  %976 = vmatpush1.msra.mxu0 %v402
  %977 = vmatprep.subr.mxu0 %v407
  %978 = vmatpush1.msra.mxu0 %v406
  %979 = vmatprep.subr.mxu0 %v411
  %980 = vmatpush1.msra.mxu0 %v410
  %981 = vmatprep.subr.mxu0 %v415
  %982 = vmatpush1.msra.mxu0 %v414
  %983 = vmatprep.subr.mxu0 %v419
  %984 = vmatpush1.msra.mxu0 %v418
  %985 = vmatprep.subr.mxu0 0.0
  %986 = vmatpush1.msra.mxu0 0.0
  %987 = vmatprep.subr.mxu0 0.0
  %988 = vmatpush1.msra.mxu0 0.0
  %989 = vmatprep.subr.mxu0 0.0
  %990 = vmatpush1.msra.mxu0 0.0
  %991 = vmatprep.subr.mxu0 0.0
  %992 = vmatpush1.msra.mxu0 0.0
  %993 = vmatprep.subr.mxu0 0.0
  %994 = vmatpush1.msra.mxu0 0.0
  %995 = vmatprep.subr.mxu0 0.0
  %996 = vmatpush1.msra.mxu0 0.0
  %997 = vmatprep.subr.mxu0 0.0
  %998 = vmatpush1.msra.mxu0 0.0
  %999 = vmatprep.subr.mxu0 0.0
  %1000 = vmatpush1.msra.mxu0 0.0
  %1001 = vmatprep.subr.mxu0 0.0
  %1002 = vmatpush1.msra.mxu0 0.0
  %1003 = vmatprep.subr.mxu0 0.0
  %1004 = vmatpush1.msra.mxu0 0.0
  %1005 = vmatprep.subr.mxu0 0.0
  %1006 = vmatpush1.msra.mxu0 0.0
  %1007 = vmatprep.subr.mxu0 0.0
  %1008 = vmatpush1.msra.mxu0 0.0
  %1009 = vmatprep.subr.mxu0 0.0
  %1010 = vmatpush1.msra.mxu0 0.0
  %1011 = vmatprep.subr.mxu0 0.0
  %1012 = vmatpush1.msra.mxu0 0.0
  %1013 = vmatprep.subr.mxu0 0.0
  %1014 = vmatpush1.msra.mxu0 0.0
  %1015 = vmatprep.subr.mxu0 0.0
  %1016 = vmatpush1.msra.mxu0 0.0
  %1017 = vmatprep.mubr.f32.mxu0 0.0
  %1018 = vmatmul.mubr.f32.gmra.mrb[0].mxu0 %v945
  %v1019 = vpop.f32.mrb[0].mxu0
  %v1020 = vadd.f32 0.0, %v1019
  %v1021 = vpop.f32.mrb[0].mxu0
  %v1022 = vadd.f32 0.0, %v1021
  %1023 = vdwg.mxu0
  %1024 = vmatprep.subr.mxu0 %v361
  %1025 = vmatpush1.msra.mxu0 %v360
  %1026 = vmatprep.subr.mxu0 %v365
  %1027 = vmatpush1.msra.mxu0 %v364
  %1028 = vmatprep.subr.mxu0 %v369
  %1029 = vmatpush1.msra.mxu0 %v368
  %1030 = vmatprep.subr.mxu0 %v373
  %1031 = vmatpush1.msra.mxu0 %v372
  %1032 = vmatprep.subr.mxu0 %v377
  %1033 = vmatpush1.msra.mxu0 %v376
  %1034 = vmatprep.subr.mxu0 %v381
  %1035 = vmatpush1.msra.mxu0 %v380
  %1036 = vmatprep.subr.mxu0 %v385
  %1037 = vmatpush1.msra.mxu0 %v384
  %1038 = vmatprep.subr.mxu0 %v389
  %1039 = vmatpush1.msra.mxu0 %v388
  %1040 = vmatprep.subr.mxu0 %v393
  %1041 = vmatpush1.msra.mxu0 %v392
  %1042 = vmatprep.subr.mxu0 %v397
  %1043 = vmatpush1.msra.mxu0 %v396
  %1044 = vmatprep.subr.mxu0 %v401
  %1045 = vmatpush1.msra.mxu0 %v400
  %1046 = vmatprep.subr.mxu0 %v405
  %1047 = vmatpush1.msra.mxu0 %v404
  %1048 = vmatprep.subr.mxu0 %v409
  %1049 = vmatpush1.msra.mxu0 %v408
  %1050 = vmatprep.subr.mxu0 %v413
  %1051 = vmatpush1.msra.mxu0 %v412
  %1052 = vmatprep.subr.mxu0 %v417
  %1053 = vmatpush1.msra.mxu0 %v416
  %1054 = vmatprep.subr.mxu0 %v421
  %1055 = vmatpush1.msra.mxu0 %v420
  %1056 = vmatprep.subr.mxu0 0.0
  %1057 = vmatpush1.msra.mxu0 0.0
  %1058 = vmatprep.subr.mxu0 0.0
  %1059 = vmatpush1.msra.mxu0 0.0
  %1060 = vmatprep.subr.mxu0 0.0
  %1061 = vmatpush1.msra.mxu0 0.0
  %1062 = vmatprep.subr.mxu0 0.0
  %1063 = vmatpush1.msra.mxu0 0.0
  %1064 = vmatprep.subr.mxu0 0.0
  %1065 = vmatpush1.msra.mxu0 0.0
  %1066 = vmatprep.subr.mxu0 0.0
  %1067 = vmatpush1.msra.mxu0 0.0
  %1068 = vmatprep.subr.mxu0 0.0
  %1069 = vmatpush1.msra.mxu0 0.0
  %1070 = vmatprep.subr.mxu0 0.0
  %1071 = vmatpush1.msra.mxu0 0.0
  %1072 = vmatprep.subr.mxu0 0.0
  %1073 = vmatpush1.msra.mxu0 0.0
  %1074 = vmatprep.subr.mxu0 0.0
  %1075 = vmatpush1.msra.mxu0 0.0
  %1076 = vmatprep.subr.mxu0 0.0
  %1077 = vmatpush1.msra.mxu0 0.0
  %1078 = vmatprep.subr.mxu0 0.0
  %1079 = vmatpush1.msra.mxu0 0.0
  %1080 = vmatprep.subr.mxu0 0.0
  %1081 = vmatpush1.msra.mxu0 0.0
  %1082 = vmatprep.subr.mxu0 0.0
  %1083 = vmatpush1.msra.mxu0 0.0
  %1084 = vmatprep.subr.mxu0 0.0
  %1085 = vmatpush1.msra.mxu0 0.0
  %1086 = vmatprep.subr.mxu0 0.0
  %1087 = vmatpush1.msra.mxu0 0.0
  %1088 = vmatprep.mubr.f32.mxu0 0.0
  %1089 = vmatmul.mubr.f32.gmra.mrb[0].mxu0 %v945
  %v1090 = vpop.f32.mrb[0].mxu0
  %v1091 = vadd.f32 0.0, %v1090
  %v1092 = vpop.f32.mrb[0].mxu0
  %v1093 = vadd.f32 0.0, %v1092
  %1094 = vdwg.mxu0
  %v1095 = vadd.f32 %v949, %v1020
  %v1096 = vadd.f32 %v950, %v1022
  %v1097 = vadd.f32 %v951, %v1091
  %v1098 = vadd.f32 %v952, %v1093
  %v1099 = vxor.u32 %v1095, 2147483648
  %v1100 = vxor.u32 %v1096, 2147483648
  %v1101 = vxor.u32 %v1097, 2147483648
  %v1102 = vmul.f32 %v1099, 1.442695
  %v1103 = vpow.pop %v1102
  %v1104 = vmul.f32 %v1100, 1.442695
  %v1105 = vpow.pop %v1104
  %v1106 = vmul.f32 %v1101, 1.442695
  %v1107 = vpow.pop %v1106
  %v1108 = vadd.f32 %v1103, 1.0
  %v1109 = vadd.f32 %v1105, 1.0
  %v1110 = vadd.f32 %v1107, 1.0
  %v1111 = vrcp.pop %v1108
  %v1112 = vmul.f32 1.0, %v1111
  %v1113 = vrcp.pop %v1109
  %v1114 = vmul.f32 1.0, %v1113
  %v1115 = vrcp.pop %v1110
  %v1116 = vmul.f32 1.0, %v1115
  %v1117 = vtanh.pop %v1098
  %v1118 = vmul.f32 %v1114, %v943
  %v1119 = vmul.f32 %v1112, %v1117
  %v1120 = vadd.f32 %v1118, %v1119
  %v1121 = vtanh.pop %v1120
  %v1122 = vmul.f32 %v1116, %v1121
  %s1123 = smul.u32 4, 4
  %s1124 = smul.addr %s1123, 8
  %s1125 = scalar_lea.vmem [#allocation2], %s1124
  %v1126 = vld [vmem:[%s1125] sm:$0xff]
  %v1127 = vld [vmem:[%s1125 + $0x8] sm:$0xff]
  %v1128 = vld [vmem:[%s1125 + $0x10] sm:$0xff]
  %v1129 = vld [vmem:[%s1125 + $0x18] sm:$0xff]
  %1130 = vmatprep.subr.mxu0 %v359
  %1131 = vmatpush1.msra.mxu0 %v358
  %1132 = vmatprep.subr.mxu0 %v363
  %1133 = vmatpush1.msra.mxu0 %v362
  %1134 = vmatprep.subr.mxu0 %v367
  %1135 = vmatpush1.msra.mxu0 %v366
  %1136 = vmatprep.subr.mxu0 %v371
  %1137 = vmatpush1.msra.mxu0 %v370
  %1138 = vmatprep.subr.mxu0 %v375
  %1139 = vmatpush1.msra.mxu0 %v374
  %1140 = vmatprep.subr.mxu0 %v379
  %1141 = vmatpush1.msra.mxu0 %v378
  %1142 = vmatprep.subr.mxu0 %v383
  %1143 = vmatpush1.msra.mxu0 %v382
  %1144 = vmatprep.subr.mxu0 %v387
  %1145 = vmatpush1.msra.mxu0 %v386
  %1146 = vmatprep.subr.mxu0 %v391
  %1147 = vmatpush1.msra.mxu0 %v390
  %1148 = vmatprep.subr.mxu0 %v395
  %1149 = vmatpush1.msra.mxu0 %v394
  %1150 = vmatprep.subr.mxu0 %v399
  %1151 = vmatpush1.msra.mxu0 %v398
  %1152 = vmatprep.subr.mxu0 %v403
  %1153 = vmatpush1.msra.mxu0 %v402
  %1154 = vmatprep.subr.mxu0 %v407
  %1155 = vmatpush1.msra.mxu0 %v406
  %1156 = vmatprep.subr.mxu0 %v411
  %1157 = vmatpush1.msra.mxu0 %v410
  %1158 = vmatprep.subr.mxu0 %v415
  %1159 = vmatpush1.msra.mxu0 %v414
  %1160 = vmatprep.subr.mxu0 %v419
  %1161 = vmatpush1.msra.mxu0 %v418
  %1162 = vmatprep.subr.mxu0 0.0
  %1163 = vmatpush1.msra.mxu0 0.0
  %1164 = vmatprep.subr.mxu0 0.0
  %1165 = vmatpush1.msra.mxu0 0.0
  %1166 = vmatprep.subr.mxu0 0.0
  %1167 = vmatpush1.msra.mxu0 0.0
  %1168 = vmatprep.subr.mxu0 0.0
  %1169 = vmatpush1.msra.mxu0 0.0
  %1170 = vmatprep.subr.mxu0 0.0
  %1171 = vmatpush1.msra.mxu0 0.0
  %1172 = vmatprep.subr.mxu0 0.0
  %1173 = vmatpush1.msra.mxu0 0.0
  %1174 = vmatprep.subr.mxu0 0.0
  %1175 = vmatpush1.msra.mxu0 0.0
  %1176 = vmatprep.subr.mxu0 0.0
  %1177 = vmatpush1.msra.mxu0 0.0
  %1178 = vmatprep.subr.mxu0 0.0
  %1179 = vmatpush1.msra.mxu0 0.0
  %1180 = vmatprep.subr.mxu0 0.0
  %1181 = vmatpush1.msra.mxu0 0.0
  %1182 = vmatprep.subr.mxu0 0.0
  %1183 = vmatpush1.msra.mxu0 0.0
  %1184 = vmatprep.subr.mxu0 0.0
  %1185 = vmatpush1.msra.mxu0 0.0
  %1186 = vmatprep.subr.mxu0 0.0
  %1187 = vmatpush1.msra.mxu0 0.0
  %1188 = vmatprep.subr.mxu0 0.0
  %1189 = vmatpush1.msra.mxu0 0.0
  %1190 = vmatprep.subr.mxu0 0.0
  %1191 = vmatpush1.msra.mxu0 0.0
  %1192 = vmatprep.subr.mxu0 0.0
  %1193 = vmatpush1.msra.mxu0 0.0
  %1194 = vmatprep.mubr.f32.mxu0 0.0
  %1195 = vmatmul.mubr.f32.gmra.mrb[0].mxu0 %v1122
  %v1196 = vpop.f32.mrb[0].mxu0
  %v1197 = vadd.f32 0.0, %v1196
  %v1198 = vpop.f32.mrb[0].mxu0
  %v1199 = vadd.f32 0.0, %v1198
  %1200 = vdwg.mxu0
  %1201 = vmatprep.subr.mxu0 %v361
  %1202 = vmatpush1.msra.mxu0 %v360
  %1203 = vmatprep.subr.mxu0 %v365
  %1204 = vmatpush1.msra.mxu0 %v364
  %1205 = vmatprep.subr.mxu0 %v369
  %1206 = vmatpush1.msra.mxu0 %v368
  %1207 = vmatprep.subr.mxu0 %v373
  %1208 = vmatpush1.msra.mxu0 %v372
  %1209 = vmatprep.subr.mxu0 %v377
  %1210 = vmatpush1.msra.mxu0 %v376
  %1211 = vmatprep.subr.mxu0 %v381
  %1212 = vmatpush1.msra.mxu0 %v380
  %1213 = vmatprep.subr.mxu0 %v385
  %1214 = vmatpush1.msra.mxu0 %v384
  %1215 = vmatprep.subr.mxu0 %v389
  %1216 = vmatpush1.msra.mxu0 %v388
  %1217 = vmatprep.subr.mxu0 %v393
  %1218 = vmatpush1.msra.mxu0 %v392
  %1219 = vmatprep.subr.mxu0 %v397
  %1220 = vmatpush1.msra.mxu0 %v396
  %1221 = vmatprep.subr.mxu0 %v401
  %1222 = vmatpush1.msra.mxu0 %v400
  %1223 = vmatprep.subr.mxu0 %v405
  %1224 = vmatpush1.msra.mxu0 %v404
  %1225 = vmatprep.subr.mxu0 %v409
  %1226 = vmatpush1.msra.mxu0 %v408
  %1227 = vmatprep.subr.mxu0 %v413
  %1228 = vmatpush1.msra.mxu0 %v412
  %1229 = vmatprep.subr.mxu0 %v417
  %1230 = vmatpush1.msra.mxu0 %v416
  %1231 = vmatprep.subr.mxu0 %v421
  %1232 = vmatpush1.msra.mxu0 %v420
  %1233 = vmatprep.subr.mxu0 0.0
  %1234 = vmatpush1.msra.mxu0 0.0
  %1235 = vmatprep.subr.mxu0 0.0
  %1236 = vmatpush1.msra.mxu0 0.0
  %1237 = vmatprep.subr.mxu0 0.0
  %1238 = vmatpush1.msra.mxu0 0.0
  %1239 = vmatprep.subr.mxu0 0.0
  %1240 = vmatpush1.msra.mxu0 0.0
  %1241 = vmatprep.subr.mxu0 0.0
  %1242 = vmatpush1.msra.mxu0 0.0
  %1243 = vmatprep.subr.mxu0 0.0
  %1244 = vmatpush1.msra.mxu0 0.0
  %1245 = vmatprep.subr.mxu0 0.0
  %1246 = vmatpush1.msra.mxu0 0.0
  %1247 = vmatprep.subr.mxu0 0.0
  %1248 = vmatpush1.msra.mxu0 0.0
  %1249 = vmatprep.subr.mxu0 0.0
  %1250 = vmatpush1.msra.mxu0 0.0
  %1251 = vmatprep.subr.mxu0 0.0
  %1252 = vmatpush1.msra.mxu0 0.0
  %1253 = vmatprep.subr.mxu0 0.0
  %1254 = vmatpush1.msra.mxu0 0.0
  %1255 = vmatprep.subr.mxu0 0.0
  %1256 = vmatpush1.msra.mxu0 0.0
  %1257 = vmatprep.subr.mxu0 0.0
  %1258 = vmatpush1.msra.mxu0 0.0
  %1259 = vmatprep.subr.mxu0 0.0
  %1260 = vmatpush1.msra.mxu0 0.0
  %1261 = vmatprep.subr.mxu0 0.0
  %1262 = vmatpush1.msra.mxu0 0.0
  %1263 = vmatprep.subr.mxu0 0.0
  %1264 = vmatpush1.msra.mxu0 0.0
  %1265 = vmatprep.mubr.f32.mxu0 0.0
  %1266 = vmatmul.mubr.f32.gmra.mrb[0].mxu0 %v1122
  %v1267 = vpop.f32.mrb[0].mxu0
  %v1268 = vadd.f32 0.0, %v1267
  %v1269 = vpop.f32.mrb[0].mxu0
  %v1270 = vadd.f32 0.0, %v1269
  %1271 = vdwg.mxu0
  %v1272 = vadd.f32 %v1126, %v1197
  %v1273 = vadd.f32 %v1127, %v1199
  %v1274 = vadd.f32 %v1128, %v1268
  %v1275 = vadd.f32 %v1129, %v1270
  %v1276 = vxor.u32 %v1272, 2147483648
  %v1277 = vxor.u32 %v1273, 2147483648
  %v1278 = vxor.u32 %v1274, 2147483648
  %v1279 = vmul.f32 %v1276, 1.442695
  %v1280 = vpow.pop %v1279
  %v1281 = vmul.f32 %v1277, 1.442695
  %v1282 = vpow.pop %v1281
  %v1283 = vmul.f32 %v1278, 1.442695
  %v1284 = vpow.pop %v1283
  %v1285 = vadd.f32 %v1280, 1.0
  %v1286 = vadd.f32 %v1282, 1.0
  %v1287 = vadd.f32 %v1284, 1.0
  %v1288 = vrcp.pop %v1285
  %v1289 = vmul.f32 1.0, %v1288
  %v1290 = vrcp.pop %v1286
  %v1291 = vmul.f32 1.0, %v1290
  %v1292 = vrcp.pop %v1287
  %v1293 = vmul.f32 1.0, %v1292
  %v1294 = vtanh.pop %v1275
  %v1295 = vmul.f32 %v1291, %v1120
  %v1296 = vmul.f32 %v1289, %v1294
  %v1297 = vadd.f32 %v1295, %v1296
  %v1298 = vtanh.pop %v1297
  %v1299 = vmul.f32 %v1293, %v1298
  %s1300 = smul.u32 5, 4
  %s1301 = smul.addr %s1300, 8
  %s1302 = scalar_lea.vmem [#allocation2], %s1301
  %v1303 = vld [vmem:[%s1302] sm:$0xff]
  %v1304 = vld [vmem:[%s1302 + $0x8] sm:$0xff]
  %v1305 = vld [vmem:[%s1302 + $0x10] sm:$0xff]
  %v1306 = vld [vmem:[%s1302 + $0x18] sm:$0xff]
  %1307 = vmatprep.subr.mxu0 %v359
  %1308 = vmatpush1.msra.mxu0 %v358
  %1309 = vmatprep.subr.mxu0 %v363
  %1310 = vmatpush1.msra.mxu0 %v362
  %1311 = vmatprep.subr.mxu0 %v367
  %1312 = vmatpush1.msra.mxu0 %v366
  %1313 = vmatprep.subr.mxu0 %v371
  %1314 = vmatpush1.msra.mxu0 %v370
  %1315 = vmatprep.subr.mxu0 %v375
  %1316 = vmatpush1.msra.mxu0 %v374
  %1317 = vmatprep.subr.mxu0 %v379
  %1318 = vmatpush1.msra.mxu0 %v378
  %1319 = vmatprep.subr.mxu0 %v383
  %1320 = vmatpush1.msra.mxu0 %v382
  %1321 = vmatprep.subr.mxu0 %v387
  %1322 = vmatpush1.msra.mxu0 %v386
  %1323 = vmatprep.subr.mxu0 %v391
  %1324 = vmatpush1.msra.mxu0 %v390
  %1325 = vmatprep.subr.mxu0 %v395
  %1326 = vmatpush1.msra.mxu0 %v394
  %1327 = vmatprep.subr.mxu0 %v399
  %1328 = vmatpush1.msra.mxu0 %v398
  %1329 = vmatprep.subr.mxu0 %v403
  %1330 = vmatpush1.msra.mxu0 %v402
  %1331 = vmatprep.subr.mxu0 %v407
  %1332 = vmatpush1.msra.mxu0 %v406
  %1333 = vmatprep.subr.mxu0 %v411
  %1334 = vmatpush1.msra.mxu0 %v410
  %1335 = vmatprep.subr.mxu0 %v415
  %1336 = vmatpush1.msra.mxu0 %v414
  %1337 = vmatprep.subr.mxu0 %v419
  %1338 = vmatpush1.msra.mxu0 %v418
  %1339 = vmatprep.subr.mxu0 0.0
  %1340 = vmatpush1.msra.mxu0 0.0
  %1341 = vmatprep.subr.mxu0 0.0
  %1342 = vmatpush1.msra.mxu0 0.0
  %1343 = vmatprep.subr.mxu0 0.0
  %1344 = vmatpush1.msra.mxu0 0.0
  %1345 = vmatprep.subr.mxu0 0.0
  %1346 = vmatpush1.msra.mxu0 0.0
  %1347 = vmatprep.subr.mxu0 0.0
  %1348 = vmatpush1.msra.mxu0 0.0
  %1349 = vmatprep.subr.mxu0 0.0
  %1350 = vmatpush1.msra.mxu0 0.0
  %1351 = vmatprep.subr.mxu0 0.0
  %1352 = vmatpush1.msra.mxu0 0.0
  %1353 = vmatprep.subr.mxu0 0.0
  %1354 = vmatpush1.msra.mxu0 0.0
  %1355 = vmatprep.subr.mxu0 0.0
  %1356 = vmatpush1.msra.mxu0 0.0
  %1357 = vmatprep.subr.mxu0 0.0
  %1358 = vmatpush1.msra.mxu0 0.0
  %1359 = vmatprep.subr.mxu0 0.0
  %1360 = vmatpush1.msra.mxu0 0.0
  %1361 = vmatprep.subr.mxu0 0.0
  %1362 = vmatpush1.msra.mxu0 0.0
  %1363 = vmatprep.subr.mxu0 0.0
  %1364 = vmatpush1.msra.mxu0 0.0
  %1365 = vmatprep.subr.mxu0 0.0
  %1366 = vmatpush1.msra.mxu0 0.0
  %1367 = vmatprep.subr.mxu0 0.0
  %1368 = vmatpush1.msra.mxu0 0.0
  %1369 = vmatprep.subr.mxu0 0.0
  %1370 = vmatpush1.msra.mxu0 0.0
  %1371 = vmatprep.mubr.f32.mxu0 0.0
  %1372 = vmatmul.mubr.f32.gmra.mrb[0].mxu0 %v1299
  %v1373 = vpop.f32.mrb[0].mxu0
  %v1374 = vadd.f32 0.0, %v1373
  %v1375 = vpop.f32.mrb[0].mxu0
  %v1376 = vadd.f32 0.0, %v1375
  %1377 = vdwg.mxu0
  %1378 = vmatprep.subr.mxu0 %v361
  %1379 = vmatpush1.msra.mxu0 %v360
  %1380 = vmatprep.subr.mxu0 %v365
  %1381 = vmatpush1.msra.mxu0 %v364
  %1382 = vmatprep.subr.mxu0 %v369
  %1383 = vmatpush1.msra.mxu0 %v368
  %1384 = vmatprep.subr.mxu0 %v373
  %1385 = vmatpush1.msra.mxu0 %v372
  %1386 = vmatprep.subr.mxu0 %v377
  %1387 = vmatpush1.msra.mxu0 %v376
  %1388 = vmatprep.subr.mxu0 %v381
  %1389 = vmatpush1.msra.mxu0 %v380
  %1390 = vmatprep.subr.mxu0 %v385
  %1391 = vmatpush1.msra.mxu0 %v384
  %1392 = vmatprep.subr.mxu0 %v389
  %1393 = vmatpush1.msra.mxu0 %v388
  %1394 = vmatprep.subr.mxu0 %v393
  %1395 = vmatpush1.msra.mxu0 %v392
  %1396 = vmatprep.subr.mxu0 %v397
  %1397 = vmatpush1.msra.mxu0 %v396
  %1398 = vmatprep.subr.mxu0 %v401
  %1399 = vmatpush1.msra.mxu0 %v400
  %1400 = vmatprep.subr.mxu0 %v405
  %1401 = vmatpush1.msra.mxu0 %v404
  %1402 = vmatprep.subr.mxu0 %v409
  %1403 = vmatpush1.msra.mxu0 %v408
  %1404 = vmatprep.subr.mxu0 %v413
  %1405 = vmatpush1.msra.mxu0 %v412
  %1406 = vmatprep.subr.mxu0 %v417
  %1407 = vmatpush1.msra.mxu0 %v416
  %1408 = vmatprep.subr.mxu0 %v421
  %1409 = vmatpush1.msra.mxu0 %v420
  %1410 = vmatprep.subr.mxu0 0.0
  %1411 = vmatpush1.msra.mxu0 0.0
  %1412 = vmatprep.subr.mxu0 0.0
  %1413 = vmatpush1.msra.mxu0 0.0
  %1414 = vmatprep.subr.mxu0 0.0
  %1415 = vmatpush1.msra.mxu0 0.0
  %1416 = vmatprep.subr.mxu0 0.0
  %1417 = vmatpush1.msra.mxu0 0.0
  %1418 = vmatprep.subr.mxu0 0.0
  %1419 = vmatpush1.msra.mxu0 0.0
  %1420 = vmatprep.subr.mxu0 0.0
  %1421 = vmatpush1.msra.mxu0 0.0
  %1422 = vmatprep.subr.mxu0 0.0
  %1423 = vmatpush1.msra.mxu0 0.0
  %1424 = vmatprep.subr.mxu0 0.0
  %1425 = vmatpush1.msra.mxu0 0.0
  %1426 = vmatprep.subr.mxu0 0.0
  %1427 = vmatpush1.msra.mxu0 0.0
  %1428 = vmatprep.subr.mxu0 0.0
  %1429 = vmatpush1.msra.mxu0 0.0
  %1430 = vmatprep.subr.mxu0 0.0
  %1431 = vmatpush1.msra.mxu0 0.0
  %1432 = vmatprep.subr.mxu0 0.0
  %1433 = vmatpush1.msra.mxu0 0.0
  %1434 = vmatprep.subr.mxu0 0.0
  %1435 = vmatpush1.msra.mxu0 0.0
  %1436 = vmatprep.subr.mxu0 0.0
  %1437 = vmatpush1.msra.mxu0 0.0
  %1438 = vmatprep.subr.mxu0 0.0
  %1439 = vmatpush1.msra.mxu0 0.0
  %1440 = vmatprep.subr.mxu0 0.0
  %1441 = vmatpush1.msra.mxu0 0.0
  %1442 = vmatprep.mubr.f32.mxu0 0.0
  %1443 = vmatmul.mubr.f32.gmra.mrb[0].mxu0 %v1299
  %v1444 = vpop.f32.mrb[0].mxu0
  %v1445 = vadd.f32 0.0, %v1444
  %v1446 = vpop.f32.mrb[0].mxu0
  %v1447 = vadd.f32 0.0, %v1446
  %1448 = vdwg.mxu0
  %v1449 = vadd.f32 %v1303, %v1374
  %v1450 = vadd.f32 %v1304, %v1376
  %v1451 = vadd.f32 %v1305, %v1445
  %v1452 = vadd.f32 %v1306, %v1447
  %v1453 = vxor.u32 %v1449, 2147483648
  %v1454 = vxor.u32 %v1450, 2147483648
  %v1455 = vxor.u32 %v1451, 2147483648
  %v1456 = vmul.f32 %v1453, 1.442695
  %v1457 = vpow.pop %v1456
  %v1458 = vmul.f32 %v1454, 1.442695
  %v1459 = vpow.pop %v1458
  %v1460 = vmul.f32 %v1455, 1.442695
  %v1461 = vpow.pop %v1460
  %v1462 = vadd.f32 %v1457, 1.0
  %v1463 = vadd.f32 %v1459, 1.0
  %v1464 = vadd.f32 %v1461, 1.0
  %v1465 = vrcp.pop %v1462
  %v1466 = vmul.f32 1.0, %v1465
  %v1467 = vrcp.pop %v1463
  %v1468 = vmul.f32 1.0, %v1467
  %v1469 = vrcp.pop %v1464
  %v1470 = vmul.f32 1.0, %v1469
  %v1471 = vtanh.pop %v1452
  %v1472 = vmul.f32 %v1468, %v1297
  %v1473 = vmul.f32 %v1466, %v1471
  %v1474 = vadd.f32 %v1472, %v1473
  %v1475 = vtanh.pop %v1474
  %v1476 = vmul.f32 %v1470, %v1475
  %s1477 = smul.u32 6, 4
  %s1478 = smul.addr %s1477, 8
  %s1479 = scalar_lea.vmem [#allocation2], %s1478
  %v1480 = vld [vmem:[%s1479] sm:$0xff]
  %v1481 = vld [vmem:[%s1479 + $0x8] sm:$0xff]
  %v1482 = vld [vmem:[%s1479 + $0x10] sm:$0xff]
  %v1483 = vld [vmem:[%s1479 + $0x18] sm:$0xff]
  %1484 = vmatprep.subr.mxu0 %v359
  %1485 = vmatpush1.msra.mxu0 %v358
  %1486 = vmatprep.subr.mxu0 %v363
  %1487 = vmatpush1.msra.mxu0 %v362
  %1488 = vmatprep.subr.mxu0 %v367
  %1489 = vmatpush1.msra.mxu0 %v366
  %1490 = vmatprep.subr.mxu0 %v371
  %1491 = vmatpush1.msra.mxu0 %v370
  %1492 = vmatprep.subr.mxu0 %v375
  %1493 = vmatpush1.msra.mxu0 %v374
  %1494 = vmatprep.subr.mxu0 %v379
  %1495 = vmatpush1.msra.mxu0 %v378
  %1496 = vmatprep.subr.mxu0 %v383
  %1497 = vmatpush1.msra.mxu0 %v382
  %1498 = vmatprep.subr.mxu0 %v387
  %1499 = vmatpush1.msra.mxu0 %v386
  %1500 = vmatprep.subr.mxu0 %v391
  %1501 = vmatpush1.msra.mxu0 %v390
  %1502 = vmatprep.subr.mxu0 %v395
  %1503 = vmatpush1.msra.mxu0 %v394
  %1504 = vmatprep.subr.mxu0 %v399
  %1505 = vmatpush1.msra.mxu0 %v398
  %1506 = vmatprep.subr.mxu0 %v403
  %1507 = vmatpush1.msra.mxu0 %v402
  %1508 = vmatprep.subr.mxu0 %v407
  %1509 = vmatpush1.msra.mxu0 %v406
  %1510 = vmatprep.subr.mxu0 %v411
  %1511 = vmatpush1.msra.mxu0 %v410
  %1512 = vmatprep.subr.mxu0 %v415
  %1513 = vmatpush1.msra.mxu0 %v414
  %1514 = vmatprep.subr.mxu0 %v419
  %1515 = vmatpush1.msra.mxu0 %v418
  %1516 = vmatprep.subr.mxu0 0.0
  %1517 = vmatpush1.msra.mxu0 0.0
  %1518 = vmatprep.subr.mxu0 0.0
  %1519 = vmatpush1.msra.mxu0 0.0
  %1520 = vmatprep.subr.mxu0 0.0
  %1521 = vmatpush1.msra.mxu0 0.0
  %1522 = vmatprep.subr.mxu0 0.0
  %1523 = vmatpush1.msra.mxu0 0.0
  %1524 = vmatprep.subr.mxu0 0.0
  %1525 = vmatpush1.msra.mxu0 0.0
  %1526 = vmatprep.subr.mxu0 0.0
  %1527 = vmatpush1.msra.mxu0 0.0
  %1528 = vmatprep.subr.mxu0 0.0
  %1529 = vmatpush1.msra.mxu0 0.0
  %1530 = vmatprep.subr.mxu0 0.0
  %1531 = vmatpush1.msra.mxu0 0.0
  %1532 = vmatprep.subr.mxu0 0.0
  %1533 = vmatpush1.msra.mxu0 0.0
  %1534 = vmatprep.subr.mxu0 0.0
  %1535 = vmatpush1.msra.mxu0 0.0
  %1536 = vmatprep.subr.mxu0 0.0
  %1537 = vmatpush1.msra.mxu0 0.0
  %1538 = vmatprep.subr.mxu0 0.0
  %1539 = vmatpush1.msra.mxu0 0.0
  %1540 = vmatprep.subr.mxu0 0.0
  %1541 = vmatpush1.msra.mxu0 0.0
  %1542 = vmatprep.subr.mxu0 0.0
  %1543 = vmatpush1.msra.mxu0 0.0
  %1544 = vmatprep.subr.mxu0 0.0
  %1545 = vmatpush1.msra.mxu0 0.0
  %1546 = vmatprep.subr.mxu0 0.0
  %1547 = vmatpush1.msra.mxu0 0.0
  %1548 = vmatprep.mubr.f32.mxu0 0.0
  %1549 = vmatmul.mubr.f32.gmra.mrb[0].mxu0 %v1476
  %v1550 = vpop.f32.mrb[0].mxu0
  %v1551 = vadd.f32 0.0, %v1550
  %v1552 = vpop.f32.mrb[0].mxu0
  %v1553 = vadd.f32 0.0, %v1552
  %1554 = vdwg.mxu0
  %1555 = vmatprep.subr.mxu0 %v361
  %1556 = vmatpush1.msra.mxu0 %v360
  %1557 = vmatprep.subr.mxu0 %v365
  %1558 = vmatpush1.msra.mxu0 %v364
  %1559 = vmatprep.subr.mxu0 %v369
  %1560 = vmatpush1.msra.mxu0 %v368
  %1561 = vmatprep.subr.mxu0 %v373
  %1562 = vmatpush1.msra.mxu0 %v372
  %1563 = vmatprep.subr.mxu0 %v377
  %1564 = vmatpush1.msra.mxu0 %v376
  %1565 = vmatprep.subr.mxu0 %v381
  %1566 = vmatpush1.msra.mxu0 %v380
  %1567 = vmatprep.subr.mxu0 %v385
  %1568 = vmatpush1.msra.mxu0 %v384
  %1569 = vmatprep.subr.mxu0 %v389
  %1570 = vmatpush1.msra.mxu0 %v388
  %1571 = vmatprep.subr.mxu0 %v393
  %1572 = vmatpush1.msra.mxu0 %v392
  %1573 = vmatprep.subr.mxu0 %v397
  %1574 = vmatpush1.msra.mxu0 %v396
  %1575 = vmatprep.subr.mxu0 %v401
  %1576 = vmatpush1.msra.mxu0 %v400
  %1577 = vmatprep.subr.mxu0 %v405
  %1578 = vmatpush1.msra.mxu0 %v404
  %1579 = vmatprep.subr.mxu0 %v409
  %1580 = vmatpush1.msra.mxu0 %v408
  %1581 = vmatprep.subr.mxu0 %v413
  %1582 = vmatpush1.msra.mxu0 %v412
  %1583 = vmatprep.subr.mxu0 %v417
  %1584 = vmatpush1.msra.mxu0 %v416
  %1585 = vmatprep.subr.mxu0 %v421
  %1586 = vmatpush1.msra.mxu0 %v420
  %1587 = vmatprep.subr.mxu0 0.0
  %1588 = vmatpush1.msra.mxu0 0.0
  %1589 = vmatprep.subr.mxu0 0.0
  %1590 = vmatpush1.msra.mxu0 0.0
  %1591 = vmatprep.subr.mxu0 0.0
  %1592 = vmatpush1.msra.mxu0 0.0
  %1593 = vmatprep.subr.mxu0 0.0
  %1594 = vmatpush1.msra.mxu0 0.0
  %1595 = vmatprep.subr.mxu0 0.0
  %1596 = vmatpush1.msra.mxu0 0.0
  %1597 = vmatprep.subr.mxu0 0.0
  %1598 = vmatpush1.msra.mxu0 0.0
  %1599 = vmatprep.subr.mxu0 0.0
  %1600 = vmatpush1.msra.mxu0 0.0
  %1601 = vmatprep.subr.mxu0 0.0
  %1602 = vmatpush1.msra.mxu0 0.0
  %1603 = vmatprep.subr.mxu0 0.0
  %1604 = vmatpush1.msra.mxu0 0.0
  %1605 = vmatprep.subr.mxu0 0.0
  %1606 = vmatpush1.msra.mxu0 0.0
  %1607 = vmatprep.subr.mxu0 0.0
  %1608 = vmatpush1.msra.mxu0 0.0
  %1609 = vmatprep.subr.mxu0 0.0
  %1610 = vmatpush1.msra.mxu0 0.0
  %1611 = vmatprep.subr.mxu0 0.0
  %1612 = vmatpush1.msra.mxu0 0.0
  %1613 = vmatprep.subr.mxu0 0.0
  %1614 = vmatpush1.msra.mxu0 0.0
  %1615 = vmatprep.subr.mxu0 0.0
  %1616 = vmatpush1.msra.mxu0 0.0
  %1617 = vmatprep.subr.mxu0 0.0
  %1618 = vmatpush1.msra.mxu0 0.0
  %1619 = vmatprep.mubr.f32.mxu0 0.0
  %1620 = vmatmul.mubr.f32.gmra.mrb[0].mxu0 %v1476
  %v1621 = vpop.f32.mrb[0].mxu0
  %v1622 = vadd.f32 0.0, %v1621
  %v1623 = vpop.f32.mrb[0].mxu0
  %v1624 = vadd.f32 0.0, %v1623
  %1625 = vdwg.mxu0
  %v1626 = vadd.f32 %v1480, %v1551
  %v1627 = vadd.f32 %v1481, %v1553
  %v1628 = vadd.f32 %v1482, %v1622
  %v1629 = vadd.f32 %v1483, %v1624
  %v1630 = vxor.u32 %v1626, 2147483648
  %v1631 = vxor.u32 %v1627, 2147483648
  %v1632 = vxor.u32 %v1628, 2147483648
  %v1633 = vmul.f32 %v1630, 1.442695
  %v1634 = vpow.pop %v1633
  %v1635 = vmul.f32 %v1631, 1.442695
  %v1636 = vpow.pop %v1635
  %v1637 = vmul.f32 %v1632, 1.442695
  %v1638 = vpow.pop %v1637
  %v1639 = vadd.f32 %v1634, 1.0
  %v1640 = vadd.f32 %v1636, 1.0
  %v1641 = vadd.f32 %v1638, 1.0
  %v1642 = vrcp.pop %v1639
  %v1643 = vmul.f32 1.0, %v1642
  %v1644 = vrcp.pop %v1640
  %v1645 = vmul.f32 1.0, %v1644
  %v1646 = vrcp.pop %v1641
  %v1647 = vmul.f32 1.0, %v1646
  %v1648 = vtanh.pop %v1629
  %v1649 = vmul.f32 %v1645, %v1474
  %v1650 = vmul.f32 %v1643, %v1648
  %v1651 = vadd.f32 %v1649, %v1650
  %v1652 = vtanh.pop %v1651
  %v1653 = vmul.f32 %v1647, %v1652
  %s1654 = smul.u32 7, 4
  %s1655 = smul.addr %s1654, 8
  %s1656 = scalar_lea.vmem [#allocation2], %s1655
  %v1657 = vld [vmem:[%s1656] sm:$0xff]
  %v1658 = vld [vmem:[%s1656 + $0x8] sm:$0xff]
  %v1659 = vld [vmem:[%s1656 + $0x10] sm:$0xff]
  %v1660 = vld [vmem:[%s1656 + $0x18] sm:$0xff]
  %1661 = vmatprep.subr.mxu0 %v359
  %1662 = vmatpush1.msra.mxu0 %v358
  %1663 = vmatprep.subr.mxu0 %v363
  %1664 = vmatpush1.msra.mxu0 %v362
  %1665 = vmatprep.subr.mxu0 %v367
  %1666 = vmatpush1.msra.mxu0 %v366
  %1667 = vmatprep.subr.mxu0 %v371
  %1668 = vmatpush1.msra.mxu0 %v370
  %1669 = vmatprep.subr.mxu0 %v375
  %1670 = vmatpush1.msra.mxu0 %v374
  %1671 = vmatprep.subr.mxu0 %v379
  %1672 = vmatpush1.msra.mxu0 %v378
  %1673 = vmatprep.subr.mxu0 %v383
  %1674 = vmatpush1.msra.mxu0 %v382
  %1675 = vmatprep.subr.mxu0 %v387
  %1676 = vmatpush1.msra.mxu0 %v386
  %1677 = vmatprep.subr.mxu0 %v391
  %1678 = vmatpush1.msra.mxu0 %v390
  %1679 = vmatprep.subr.mxu0 %v395
  %1680 = vmatpush1.msra.mxu0 %v394
  %1681 = vmatprep.subr.mxu0 %v399
  %1682 = vmatpush1.msra.mxu0 %v398
  %1683 = vmatprep.subr.mxu0 %v403
  %1684 = vmatpush1.msra.mxu0 %v402
  %1685 = vmatprep.subr.mxu0 %v407
  %1686 = vmatpush1.msra.mxu0 %v406
  %1687 = vmatprep.subr.mxu0 %v411
  %1688 = vmatpush1.msra.mxu0 %v410
  %1689 = vmatprep.subr.mxu0 %v415
  %1690 = vmatpush1.msra.mxu0 %v414
  %1691 = vmatprep.subr.mxu0 %v419
  %1692 = vmatpush1.msra.mxu0 %v418
  %1693 = vmatprep.subr.mxu0 0.0
  %1694 = vmatpush1.msra.mxu0 0.0
  %1695 = vmatprep.subr.mxu0 0.0
  %1696 = vmatpush1.msra.mxu0 0.0
  %1697 = vmatprep.subr.mxu0 0.0
  %1698 = vmatpush1.msra.mxu0 0.0
  %1699 = vmatprep.subr.mxu0 0.0
  %1700 = vmatpush1.msra.mxu0 0.0
  %1701 = vmatprep.subr.mxu0 0.0
  %1702 = vmatpush1.msra.mxu0 0.0
  %1703 = vmatprep.subr.mxu0 0.0
  %1704 = vmatpush1.msra.mxu0 0.0
  %1705 = vmatprep.subr.mxu0 0.0
  %1706 = vmatpush1.msra.mxu0 0.0
  %1707 = vmatprep.subr.mxu0 0.0
  %1708 = vmatpush1.msra.mxu0 0.0
  %1709 = vmatprep.subr.mxu0 0.0
  %1710 = vmatpush1.msra.mxu0 0.0
  %1711 = vmatprep.subr.mxu0 0.0
  %1712 = vmatpush1.msra.mxu0 0.0
  %1713 = vmatprep.subr.mxu0 0.0
  %1714 = vmatpush1.msra.mxu0 0.0
  %1715 = vmatprep.subr.mxu0 0.0
  %1716 = vmatpush1.msra.mxu0 0.0
  %1717 = vmatprep.subr.mxu0 0.0
  %1718 = vmatpush1.msra.mxu0 0.0
  %1719 = vmatprep.subr.mxu0 0.0
  %1720 = vmatpush1.msra.mxu0 0.0
  %1721 = vmatprep.subr.mxu0 0.0
  %1722 = vmatpush1.msra.mxu0 0.0
  %1723 = vmatprep.subr.mxu0 0.0
  %1724 = vmatpush1.msra.mxu0 0.0
  %1725 = vmatprep.mubr.f32.mxu0 0.0
  %1726 = vmatmul.mubr.f32.gmra.mrb[0].mxu0 %v1653
  %v1727 = vpop.f32.mrb[0].mxu0
  %v1728 = vadd.f32 0.0, %v1727
  %v1729 = vpop.f32.mrb[0].mxu0
  %v1730 = vadd.f32 0.0, %v1729
  %1731 = vdwg.mxu0
  %1732 = vmatprep.subr.mxu0 %v361
  %1733 = vmatpush1.msra.mxu0 %v360
  %1734 = vmatprep.subr.mxu0 %v365
  %1735 = vmatpush1.msra.mxu0 %v364
  %1736 = vmatprep.subr.mxu0 %v369
  %1737 = vmatpush1.msra.mxu0 %v368
  %1738 = vmatprep.subr.mxu0 %v373
  %1739 = vmatpush1.msra.mxu0 %v372
  %1740 = vmatprep.subr.mxu0 %v377
  %1741 = vmatpush1.msra.mxu0 %v376
  %1742 = vmatprep.subr.mxu0 %v381
  %1743 = vmatpush1.msra.mxu0 %v380
  %1744 = vmatprep.subr.mxu0 %v385
  %1745 = vmatpush1.msra.mxu0 %v384
  %1746 = vmatprep.subr.mxu0 %v389
  %1747 = vmatpush1.msra.mxu0 %v388
  %1748 = vmatprep.subr.mxu0 %v393
  %1749 = vmatpush1.msra.mxu0 %v392
  %1750 = vmatprep.subr.mxu0 %v397
  %1751 = vmatpush1.msra.mxu0 %v396
  %1752 = vmatprep.subr.mxu0 %v401
  %1753 = vmatpush1.msra.mxu0 %v400
  %1754 = vmatprep.subr.mxu0 %v405
  %1755 = vmatpush1.msra.mxu0 %v404
  %1756 = vmatprep.subr.mxu0 %v409
  %1757 = vmatpush1.msra.mxu0 %v408
  %1758 = vmatprep.subr.mxu0 %v413
  %1759 = vmatpush1.msra.mxu0 %v412
  %1760 = vmatprep.subr.mxu0 %v417
  %1761 = vmatpush1.msra.mxu0 %v416
  %1762 = vmatprep.subr.mxu0 %v421
  %1763 = vmatpush1.msra.mxu0 %v420
  %1764 = vmatprep.subr.mxu0 0.0
  %1765 = vmatpush1.msra.mxu0 0.0
  %1766 = vmatprep.subr.mxu0 0.0
  %1767 = vmatpush1.msra.mxu0 0.0
  %1768 = vmatprep.subr.mxu0 0.0
  %1769 = vmatpush1.msra.mxu0 0.0
  %1770 = vmatprep.subr.mxu0 0.0
  %1771 = vmatpush1.msra.mxu0 0.0
  %1772 = vmatprep.subr.mxu0 0.0
  %1773 = vmatpush1.msra.mxu0 0.0
  %1774 = vmatprep.subr.mxu0 0.0
  %1775 = vmatpush1.msra.mxu0 0.0
  %1776 = vmatprep.subr.mxu0 0.0
  %1777 = vmatpush1.msra.mxu0 0.0
  %1778 = vmatprep.subr.mxu0 0.0
  %1779 = vmatpush1.msra.mxu0 0.0
  %1780 = vmatprep.subr.mxu0 0.0
  %1781 = vmatpush1.msra.mxu0 0.0
  %1782 = vmatprep.subr.mxu0 0.0
  %1783 = vmatpush1.msra.mxu0 0.0
  %1784 = vmatprep.subr.mxu0 0.0
  %1785 = vmatpush1.msra.mxu0 0.0
  %1786 = vmatprep.subr.mxu0 0.0
  %1787 = vmatpush1.msra.mxu0 0.0
  %1788 = vmatprep.subr.mxu0 0.0
  %1789 = vmatpush1.msra.mxu0 0.0
  %1790 = vmatprep.subr.mxu0 0.0
  %1791 = vmatpush1.msra.mxu0 0.0
  %1792 = vmatprep.subr.mxu0 0.0
  %1793 = vmatpush1.msra.mxu0 0.0
  %1794 = vmatprep.subr.mxu0 0.0
  %1795 = vmatpush1.msra.mxu0 0.0
  %1796 = vmatprep.mubr.f32.mxu0 0.0
  %1797 = vmatmul.mubr.f32.gmra.mrb[0].mxu0 %v1653
  %v1798 = vpop.f32.mrb[0].mxu0
  %v1799 = vadd.f32 0.0, %v1798
  %v1800 = vpop.f32.mrb[0].mxu0
  %v1801 = vadd.f32 0.0, %v1800
  %1802 = vdwg.mxu0
  %v1803 = vadd.f32 %v1657, %v1728
  %v1804 = vadd.f32 %v1658, %v1730
  %v1805 = vadd.f32 %v1659, %v1799
  %v1806 = vadd.f32 %v1660, %v1801
  %v1807 = vxor.u32 %v1803, 2147483648
  %v1808 = vxor.u32 %v1804, 2147483648
  %v1809 = vxor.u32 %v1805, 2147483648
  %v1810 = vmul.f32 %v1807, 1.442695
  %v1811 = vpow.pop %v1810
  %v1812 = vmul.f32 %v1808, 1.442695
  %v1813 = vpow.pop %v1812
  %v1814 = vmul.f32 %v1809, 1.442695
  %v1815 = vpow.pop %v1814
  %v1816 = vadd.f32 %v1811, 1.0
  %v1817 = vadd.f32 %v1813, 1.0
  %v1818 = vadd.f32 %v1815, 1.0
  %v1819 = vrcp.pop %v1816
  %v1820 = vmul.f32 1.0, %v1819
  %v1821 = vrcp.pop %v1817
  %v1822 = vmul.f32 1.0, %v1821
  %v1823 = vrcp.pop %v1818
  %v1824 = vmul.f32 1.0, %v1823
  %v1825 = vtanh.pop %v1806
  %v1826 = vmul.f32 %v1822, %v1651
  %v1827 = vmul.f32 %v1820, %v1825
  %v1828 = vadd.f32 %v1826, %v1827
  %v1829 = vtanh.pop %v1828
  %v1830 = vmul.f32 %v1824, %v1829
  %v1831 = vld [vmem:[%s4] sm:$0xff]
  %v1832 = vld [vmem:[%s4 + $0x8] sm:$0xff]
  %v1833 = vld [vmem:[%s4 + $0x10] sm:$0xff]
  %v1834 = vld [vmem:[%s4 + $0x18] sm:$0xff]
  %v1835 = vld [vmem:[%s4 + $0x20] sm:$0xff]
  %v1836 = vld [vmem:[%s4 + $0x28] sm:$0xff]
  %v1837 = vld [vmem:[%s4 + $0x30] sm:$0xff]
  %v1838 = vld [vmem:[%s4 + $0x38] sm:$0xff]
  %v1839 = vld [vmem:[%s4 + $0x40] sm:$0xff]
  %v1840 = vld [vmem:[%s4 + $0x48] sm:$0xff]
  %v1841 = vld [vmem:[%s4 + $0x50] sm:$0xff]
  %v1842 = vld [vmem:[%s4 + $0x58] sm:$0xff]
  %v1843 = vld [vmem:[%s4 + $0x60] sm:$0xff]
  %v1844 = vld [vmem:[%s4 + $0x68] sm:$0xff]
  %v1845 = vld [vmem:[%s4 + $0x70] sm:$0xff]
  %v1846 = vld [vmem:[%s4 + $0x78] sm:$0xff]
  %v1847 = vld [vmem:[%s5] sm:$0x1]
  %v1849 = vlaneseq
  %v1850 = vshrl.u32 %v1849, 7
  %v1851 = vsub.s32 0, %v1850
  %v1852 = vrot.slane %v1847, %v1851
  %1854 = vmatprep.subr.mxu0 0.0
  %1855 = vmatpush1.msra.mxu0 %v1831
  %1856 = vmatprep.subr.mxu0 0.0
  %1857 = vmatpush1.msra.mxu0 %v1832
  %1858 = vmatprep.subr.mxu0 0.0
  %1859 = vmatpush1.msra.mxu0 %v1833
  %1860 = vmatprep.subr.mxu0 0.0
  %1861 = vmatpush1.msra.mxu0 %v1834
  %1862 = vmatprep.subr.mxu0 0.0
  %1863 = vmatpush1.msra.mxu0 %v1835
  %1864 = vmatprep.subr.mxu0 0.0
  %1865 = vmatpush1.msra.mxu0 %v1836
  %1866 = vmatprep.subr.mxu0 0.0
  %1867 = vmatpush1.msra.mxu0 %v1837
  %1868 = vmatprep.subr.mxu0 0.0
  %1869 = vmatpush1.msra.mxu0 %v1838
  %1870 = vmatprep.subr.mxu0 0.0
  %1871 = vmatpush1.msra.mxu0 %v1839
  %1872 = vmatprep.subr.mxu0 0.0
  %1873 = vmatpush1.msra.mxu0 %v1840
  %1874 = vmatprep.subr.mxu0 0.0
  %1875 = vmatpush1.msra.mxu0 %v1841
  %1876 = vmatprep.subr.mxu0 0.0
  %1877 = vmatpush1.msra.mxu0 %v1842
  %1878 = vmatprep.subr.mxu0 0.0
  %1879 = vmatpush1.msra.mxu0 %v1843
  %1880 = vmatprep.subr.mxu0 0.0
  %1881 = vmatpush1.msra.mxu0 %v1844
  %1882 = vmatprep.subr.mxu0 0.0
  %1883 = vmatpush1.msra.mxu0 %v1845
  %1884 = vmatprep.subr.mxu0 0.0
  %1885 = vmatpush1.msra.mxu0 %v1846
  %1886 = vmatprep.subr.mxu0 0.0
  %1887 = vmatpush1.msra.mxu0 0.0
  %1888 = vmatprep.subr.mxu0 0.0
  %1889 = vmatpush1.msra.mxu0 0.0
  %1890 = vmatprep.subr.mxu0 0.0
  %1891 = vmatpush1.msra.mxu0 0.0
  %1892 = vmatprep.subr.mxu0 0.0
  %1893 = vmatpush1.msra.mxu0 0.0
  %1894 = vmatprep.subr.mxu0 0.0
  %1895 = vmatpush1.msra.mxu0 0.0
  %1896 = vmatprep.subr.mxu0 0.0
  %1897 = vmatpush1.msra.mxu0 0.0
  %1898 = vmatprep.subr.mxu0 0.0
  %1899 = vmatpush1.msra.mxu0 0.0
  %1900 = vmatprep.subr.mxu0 0.0
  %1901 = vmatpush1.msra.mxu0 0.0
  %1902 = vmatprep.subr.mxu0 0.0
  %1903 = vmatpush1.msra.mxu0 0.0
  %1904 = vmatprep.subr.mxu0 0.0
  %1905 = vmatpush1.msra.mxu0 0.0
  %1906 = vmatprep.subr.mxu0 0.0
  %1907 = vmatpush1.msra.mxu0 0.0
  %1908 = vmatprep.subr.mxu0 0.0
  %1909 = vmatpush1.msra.mxu0 0.0
  %1910 = vmatprep.subr.mxu0 0.0
  %1911 = vmatpush1.msra.mxu0 0.0
  %1912 = vmatprep.subr.mxu0 0.0
  %1913 = vmatpush1.msra.mxu0 0.0
  %1914 = vmatprep.subr.mxu0 0.0
  %1915 = vmatpush1.msra.mxu0 0.0
  %1916 = vmatprep.subr.mxu0 0.0
  %1917 = vmatpush1.msra.mxu0 0.0
  %1918 = vmatprep.mubr.f32.mxu0 0.0
  %1919 = vmatmul.mubr.f32.gmra.mrb[0].mxu0 %v1830
  %v1920 = vpop.f32.mrb[0].mxu0
  %v1921 = vadd.f32 %v1852, %v1920
  %v1922 = vpop.f32.mrb[0].mxu0
  %1923 = vdwg.mxu0
  %1924 = vst [vmem:[%s6] sm:$0xff] %v1921
  // Predicated region
  $region26: #{simple_lstm_forward.1} parent=0 // pred_check
    _
  $region27: #{simple_lstm_forward.1} parent=0 // pred_check_branch
    %1926 = sbr.rel (0) target = $region29
  $region28: #{simple_lstm_forward.1} parent=0 // pred_region
    _
  $region29: #{simple_lstm_forward.1} parent=0 // pred_fallthru
    _
  // Predicated region
  $region30: #{simple_lstm_forward.1} parent=0 // pred_check
    _
  $region31: #{simple_lstm_forward.1} parent=0 // pred_check_branch
    %1928 = sbr.rel (0) target = $region33
  $region32: #{simple_lstm_forward.1} parent=0 // pred_region
    _
  $region33: #{simple_lstm_forward.1} parent=0 // pred_fallthru
    _

</llo_original>
